<compile_context>
chip_gen: v7x
topology: tpu7x:2x2x1
jax: 0.10.0
libtpu: 0.0.40
codegen_flags: <defaults>
</compile_context>

<pallas_src>
import functools

import jax
import jax.numpy as jnp
import numpy as np
from jax import lax
from jax.experimental import pallas as pl
from jax.experimental.pallas import tpu as pltpu

_LSKA_CFG = {
    # k_size: (k0, pad0, ks, pad_s, dil_s)
    7:  (3, 1, 3, 2, 2),
    11: (3, 1, 5, 4, 2),
    23: (5, 2, 7, 9, 3),
    35: (5, 2, 11, 15, 3),
    41: (5, 2, 13, 18, 3),
    53: (5, 2, 17, 24, 3),
}


def _lska_kernel(k0, pad0, ks, pad_s, dil_s, H, W, C, PL, PR,
                 x_ref, w0h_ref, b0h_ref, w0v_ref, b0v_ref,
                 wsh_ref, bsh_ref, wsv_ref, bsv_ref, w1_ref, b1_ref,
                 o_ref, hpad_ref, vpad_ref):
    """One batch element, channels-last (H, W, C) with C on lanes."""
    P = pad_s  # vertical halo of the H-haloed scratch

    # Zero ONLY the halo strips (the interiors are fully overwritten by each
    # conv's staging store below; the halos are never written, so they stay
    # zero for both convs that use each scratch).  Do NOT gate this on
    # pl.program_id(0)==0: with the batch axis "parallel" the second
    # TensorCore on v7x never executes step 0 and would read garbage halos.
    hpad_ref[:, pl.ds(0, PL), :] = jnp.zeros((H, PL, C), hpad_ref.dtype)
    hpad_ref[:, pl.ds(PL + W, PR), :] = jnp.zeros((H, PR, C), hpad_ref.dtype)
    vpad_ref[pl.ds(0, P), :, :] = jnp.zeros((P, W, C), vpad_ref.dtype)
    vpad_ref[pl.ds(P + H, P), :, :] = jnp.zeros((P, W, C), vpad_ref.dtype)

    def dw_conv_w(a, w_ref, b_ref, k, pad, dil):
        """Depthwise conv along W: out = b + sum_t w[t] * a[:, w+t*dil-pad, :]."""
        # Interior store starts at sublane-aligned offset PL -> unmasked vst.
        hpad_ref[:, pl.ds(PL, W), :] = a.astype(hpad_ref.dtype)
        # Bias folded into tap 0 (saves one full-map VPU add per conv).
        acc = w_ref[0][None] * hpad_ref[:, pl.ds(PL - pad, W), :] + b_ref[...]
        for t in range(1, k):
            off = PL - pad + t * dil    # static offset into zero-haloed scratch
            acc = acc + w_ref[t][None] * hpad_ref[:, pl.ds(off, W), :]
        return acc

    def dw_conv_h(a, w_ref, b_ref, k, pad, dil):
        """Depthwise conv along H: offsets are on the untiled leading axis."""
        vpad_ref[pl.ds(P, H), :, :] = a.astype(vpad_ref.dtype)
        acc = w_ref[0][None] * vpad_ref[pl.ds(P - pad, H), :, :] + b_ref[...]
        for t in range(1, k):
            off = P - pad + t * dil
            acc = acc + w_ref[t][None] * vpad_ref[pl.ds(off, H), :, :]
        return acc

    attn = dw_conv_w(x_ref[0], w0h_ref, b0h_ref, k0, pad0, 1)
    attn = dw_conv_h(attn,     w0v_ref, b0v_ref, k0, pad0, 1)
    attn = dw_conv_w(attn,     wsh_ref, bsh_ref, ks, pad_s, dil_s)
    attn = dw_conv_h(attn,     wsv_ref, bsv_ref, ks, pad_s, dil_s)

    # 1x1 pointwise conv as one MXU matmul (f32 accumulate).  Reshape happens
    # in f32 (relayout-free when W % 8 == 0); operands cast to the MXU dtype
    # (bf16 on the default path — native on all three MXU generations).
    attn2d = attn.reshape(H * W, C).astype(w1_ref.dtype)
    out2d = jnp.dot(attn2d, w1_ref[...], preferred_element_type=jnp.float32)
    out = out2d.reshape(H, W, C) + b1_ref[...]

    o_ref[0] = (x_ref[0] * out).astype(o_ref.dtype)   # u * attn


def lska_forward(x, params, k_size=7, *, mxu_bf16=True):
    B, C, H, W = x.shape
    k0, pad0, ks, pad_s, dil_s = _LSKA_CFG[k_size]
    (w0h, b0h, w0v, b0v, wsh, bsh, wsv, bsv, w1, b1) = params
    dt = x.dtype
    itemsize = jnp.dtype(dt).itemsize

    # Sublane multiple for the scratch dtype: 8 (f32), 16 (bf16), 32 (int8).
    sub = max(8, 32 // itemsize)
    PL = ((pad_s + sub - 1) // sub) * sub   # aligned left halo of hpad
    PR = pad_s                              # right halo (tiny masked zero)
    P = pad_s

    # Channels-last activations: NCHW -> NHWC (C on the lane axis in-kernel).
    x_nhwc = jnp.transpose(x, (0, 2, 3, 1))

    # Compact, lane-friendly weight layouts (no trailing (1,1) dims).
    def dwz(w):  # (C, k) -> (k, 1, C) f32 taps
        return jnp.transpose(w).astype(jnp.float32)[:, None, :]

    w0h_k, w0v_k, wsh_k, wsv_k = dwz(w0h), dwz(w0v), dwz(wsh), dwz(wsv)
    b0h_k = b0h.astype(jnp.float32).reshape(1, 1, C)
    b0v_k = b0v.astype(jnp.float32).reshape(1, 1, C)
    bsh_k = bsh.astype(jnp.float32).reshape(1, 1, C)
    bsv_k = bsv.astype(jnp.float32).reshape(1, 1, C)
    mxu_dt = jnp.bfloat16 if mxu_bf16 else jnp.float32
    w1_k = jnp.transpose(w1).astype(mxu_dt)          # (c_in, c_out), pre-cast
    b1_k = b1.astype(jnp.float32).reshape(1, 1, C)

    kernel = functools.partial(_lska_kernel, k0, pad0, ks, pad_s, dil_s,
                               H, W, C, PL, PR)

    def full_spec(a):
        nd = a.ndim
        return pl.BlockSpec(a.shape, lambda b, _nd=nd: (0,) * _nd)

    taps = 2 * (k0 + ks)
    flops = int(B * H * W * C * (2 * taps + 2 * C + 2))
    bytes_accessed = int(2 * B * H * W * C * itemsize)

    # Explicit scoped-VMEM budget: double-buffered in/out blocks + the two
    # haloed scratches + a few live f32 intermediates, with 2x headroom.
    blk = H * W * C * itemsize
    scratch = (H * (W + PL + PR) + (H + 2 * P) * W) * C * itemsize
    interm = 6 * H * W * C * 4
    vmem_limit = int(min(96 * 2**20, max(16 * 2**20,
                                         2 * (4 * blk + scratch + interm))))

    out_nhwc = pl.pallas_call(
        kernel,
        out_shape=jax.ShapeDtypeStruct((B, H, W, C), dt),
        grid=(B,),
        in_specs=[pl.BlockSpec((1, H, W, C), lambda b: (b, 0, 0, 0))] +
                 [full_spec(a) for a in (w0h_k, b0h_k, w0v_k, b0v_k,
                                         wsh_k, bsh_k, wsv_k, bsv_k,
                                         w1_k, b1_k)],
        out_specs=pl.BlockSpec((1, H, W, C), lambda b: (b, 0, 0, 0)),
        scratch_shapes=[pltpu.VMEM((H, W + PL + PR, C), dt),   # W-haloed
                        pltpu.VMEM((H + 2 * P, W, C), dt)],    # H-haloed
        compiler_params=pltpu.CompilerParams(
            dimension_semantics=("parallel",),
            vmem_limit_bytes=vmem_limit),
        cost_estimate=pl.CostEstimate(flops=flops, transcendentals=0,
                                      bytes_accessed=bytes_accessed),
    )(x_nhwc, w0h_k, b0h_k, w0v_k, b0v_k, wsh_k, bsh_k, wsv_k, bsv_k, w1_k, b1_k)

    return jnp.transpose(out_nhwc, (0, 3, 1, 2))


def lska_reference(x, params, k_size=7):
    """Pure-JAX reference mirroring the PyTorch module (NCHW, f32-precise)."""
    k0, pad0, ks, pad_s, dil_s = _LSKA_CFG[k_size]
    (w0h, b0h, w0v, b0v, wsh, bsh, wsv, bsv, w1, b1) = params
    C = x.shape[1]
    dn = ('NCHW', 'OIHW', 'NCHW')
    prec = lax.Precision.HIGHEST

    def dw(xx, w, b, horiz, k, pad, dil):
        if horiz:
            rhs = w.reshape(C, 1, 1, k)
            padding = ((0, 0), (pad, pad))
            rdil = (1, dil)
        else:
            rhs = w.reshape(C, 1, k, 1)
            padding = ((pad, pad), (0, 0))
            rdil = (dil, 1)
        y = lax.conv_general_dilated(xx, rhs, (1, 1), padding,
                                     rhs_dilation=rdil, dimension_numbers=dn,
                                     feature_group_count=C, precision=prec)
        return y + b[None, :, None, None]

    attn = dw(x, w0h, b0h, True, k0, pad0, 1)
    attn = dw(attn, w0v, b0v, False, k0, pad0, 1)
    attn = dw(attn, wsh, bsh, True, ks, pad_s, dil_s)
    attn = dw(attn, wsv, bsv, False, ks, pad_s, dil_s)
    attn = lax.conv_general_dilated(attn, w1.reshape(C, C, 1, 1), (1, 1),
                                    ((0, 0), (0, 0)), dimension_numbers=dn,
                                    precision=prec)
    attn = attn + b1[None, :, None, None]
    return x * attn


if __name__ == "__main__":
    B, C, H, W = 2, 4, 16, 16
    k_size = 7
    k0, pad0, ks, pad_s, dil_s = _LSKA_CFG[k_size]

    keys = jax.random.split(jax.random.PRNGKey(0), 11)
    x = jax.random.normal(keys[0], (B, C, H, W), jnp.float32)
    params = (
        0.2 * jax.random.normal(keys[1], (C, k0), jnp.float32),   # conv0h w
        0.1 * jax.random.normal(keys[2], (C,), jnp.float32),      # conv0h b
        0.2 * jax.random.normal(keys[3], (C, k0), jnp.float32),   # conv0v w
        0.1 * jax.random.normal(keys[4], (C,), jnp.float32),      # conv0v b
        0.2 * jax.random.normal(keys[5], (C, ks), jnp.float32),   # conv_spatial_h w
        0.1 * jax.random.normal(keys[6], (C,), jnp.float32),      # conv_spatial_h b
        0.2 * jax.random.normal(keys[7], (C, ks), jnp.float32),   # conv_spatial_v w
        0.1 * jax.random.normal(keys[8], (C,), jnp.float32),      # conv_spatial_v b
        0.2 * jax.random.normal(keys[9], (C, C), jnp.float32),    # conv1 w (co, ci)
        0.1 * jax.random.normal(keys[10], (C,), jnp.float32),     # conv1 b
    )

    ref = lska_reference(x, params, k_size)

    # f32-MXU path (tolerance covers MXU f32 matmul decomposition vs XLA).
    out_f32 = jax.block_until_ready(
        lska_forward(x, params, k_size, mxu_bf16=False))
    np.testing.assert_allclose(np.asarray(out_f32), np.asarray(ref),
                               atol=5e-3, rtol=5e-3)

    # Default bf16-MXU path (the perf path on v5e/v6e/v7x); bf16 rounding of
    # the 1x1-conv operands loosens the tolerance slightly.
    out_bf16 = jax.block_until_ready(
        lska_forward(x, params, k_size, mxu_bf16=True))
    np.testing.assert_allclose(np.asarray(out_bf16), np.asarray(ref),
                               atol=3e-2, rtol=3e-2)

    print("KERNEL_OK")
</pallas_src>

<mosaic_0001>
module attributes {stable_mosaic.version = 11 : i64} {
  func.func @_lska_kernel(%arg0: i32, %arg1: memref<1x16x16x4xf32, #tpu.memory_space<vmem>>, %arg2: memref<3x1x4xf32, #tpu.memory_space<vmem>>, %arg3: memref<1x1x4xf32, #tpu.memory_space<vmem>>, %arg4: memref<3x1x4xf32, #tpu.memory_space<vmem>>, %arg5: memref<1x1x4xf32, #tpu.memory_space<vmem>>, %arg6: memref<3x1x4xf32, #tpu.memory_space<vmem>>, %arg7: memref<1x1x4xf32, #tpu.memory_space<vmem>>, %arg8: memref<3x1x4xf32, #tpu.memory_space<vmem>>, %arg9: memref<1x1x4xf32, #tpu.memory_space<vmem>>, %arg10: memref<4x4xf32, #tpu.memory_space<vmem>>, %arg11: memref<1x1x4xf32, #tpu.memory_space<vmem>>, %arg12: memref<1x16x16x4xf32, #tpu.memory_space<vmem>>, %arg13: memref<16x26x4xf32, #tpu.memory_space<vmem>>, %arg14: memref<20x16x4xf32, #tpu.memory_space<vmem>>) attributes {dimension_semantics = [#tpu.dimension_semantics<parallel>], iteration_bounds = array<i64: 2>, scalar_prefetch = 0 : i64, scratch_operands = 2 : i64, tpu.core_type = #tpu.core_type<tc>, window_params = [{transform_indices = @transform_0, window_bounds = array<i64: 1, 16, 16, 4>}, {pipeline_mode = #tpu.pipeline_mode<synchronous>, transform_indices = @transform_1, window_bounds = array<i64: 3, 1, 4>}, {pipeline_mode = #tpu.pipeline_mode<synchronous>, transform_indices = @transform_2, window_bounds = array<i64: 1, 1, 4>}, {pipeline_mode = #tpu.pipeline_mode<synchronous>, transform_indices = @transform_3, window_bounds = array<i64: 3, 1, 4>}, {pipeline_mode = #tpu.pipeline_mode<synchronous>, transform_indices = @transform_4, window_bounds = array<i64: 1, 1, 4>}, {pipeline_mode = #tpu.pipeline_mode<synchronous>, transform_indices = @transform_5, window_bounds = array<i64: 3, 1, 4>}, {pipeline_mode = #tpu.pipeline_mode<synchronous>, transform_indices = @transform_6, window_bounds = array<i64: 1, 1, 4>}, {pipeline_mode = #tpu.pipeline_mode<synchronous>, transform_indices = @transform_7, window_bounds = array<i64: 3, 1, 4>}, {pipeline_mode = #tpu.pipeline_mode<synchronous>, transform_indices = @transform_8, window_bounds = array<i64: 1, 1, 4>}, {pipeline_mode = #tpu.pipeline_mode<synchronous>, transform_indices = @transform_9, window_bounds = array<i64: 4, 4>}, {pipeline_mode = #tpu.pipeline_mode<synchronous>, transform_indices = @transform_10, window_bounds = array<i64: 1, 1, 4>}, {transform_indices = @transform_11, window_bounds = array<i64: 1, 16, 16, 4>}]} {
    %cst = arith.constant 0.000000e+00 : f32
    %0 = vector.broadcast %cst : f32 to vector<16x8x4xf32>
    %c0 = arith.constant 0 : index
    %c0_0 = arith.constant 0 : index
    %c0_1 = arith.constant 0 : index
    %1 = vector.load %arg13[%c0, %c0_0, %c0_1] : memref<16x26x4xf32, #tpu.memory_space<vmem>>, vector<16x8x4xf32>
    tpu.vector_store %arg13[%c0, %c0_0, %c0_1], %0 {strides = array<i32>} : memref<16x26x4xf32, #tpu.memory_space<vmem>>, vector<16x8x4xf32>,
    %cst_2 = arith.constant 0.000000e+00 : f32
    %2 = vector.broadcast %cst_2 : f32 to vector<16x2x4xf32>
    %c0_3 = arith.constant 0 : index
    %c24 = arith.constant 24 : index
    %c0_4 = arith.constant 0 : index
    %3 = vector.load %arg13[%c0_3, %c24, %c0_4] : memref<16x26x4xf32, #tpu.memory_space<vmem>>, vector<16x2x4xf32>
    tpu.vector_store %arg13[%c0_3, %c24, %c0_4], %2 {strides = array<i32>} : memref<16x26x4xf32, #tpu.memory_space<vmem>>, vector<16x2x4xf32>,
    %cst_5 = arith.constant 0.000000e+00 : f32
    %4 = vector.broadcast %cst_5 : f32 to vector<2x16x4xf32>
    %c0_6 = arith.constant 0 : index
    %c0_7 = arith.constant 0 : index
    %c0_8 = arith.constant 0 : index
    %5 = vector.load %arg14[%c0_6, %c0_7, %c0_8] : memref<20x16x4xf32, #tpu.memory_space<vmem>>, vector<2x16x4xf32>
    tpu.vector_store %arg14[%c0_6, %c0_7, %c0_8], %4 {strides = array<i32>} : memref<20x16x4xf32, #tpu.memory_space<vmem>>, vector<2x16x4xf32>,
    %cst_9 = arith.constant 0.000000e+00 : f32
    %6 = vector.broadcast %cst_9 : f32 to vector<2x16x4xf32>
    %c18 = arith.constant 18 : index
    %c0_10 = arith.constant 0 : index
    %c0_11 = arith.constant 0 : index
    %7 = vector.load %arg14[%c18, %c0_10, %c0_11] : memref<20x16x4xf32, #tpu.memory_space<vmem>>, vector<2x16x4xf32>
    tpu.vector_store %arg14[%c18, %c0_10, %c0_11], %6 {strides = array<i32>} : memref<20x16x4xf32, #tpu.memory_space<vmem>>, vector<2x16x4xf32>,
    %c0_12 = arith.constant 0 : index
    %c0_13 = arith.constant 0 : index
    %c0_14 = arith.constant 0 : index
    %c0_15 = arith.constant 0 : index
    %8 = vector.load %arg1[%c0_12, %c0_13, %c0_14, %c0_15] : memref<1x16x16x4xf32, #tpu.memory_space<vmem>>, vector<1x16x16x4xf32>
    %9 = vector.shape_cast %8 : vector<1x16x16x4xf32> to vector<16x16x4xf32>
    %c0_16 = arith.constant 0 : index
    %c8 = arith.constant 8 : index
    %c0_17 = arith.constant 0 : index
    %10 = vector.load %arg13[%c0_16, %c8, %c0_17] : memref<16x26x4xf32, #tpu.memory_space<vmem>>, vector<16x16x4xf32>
    tpu.vector_store %arg13[%c0_16, %c8, %c0_17], %9 {strides = array<i32>} : memref<16x26x4xf32, #tpu.memory_space<vmem>>, vector<16x16x4xf32>,
    %c0_18 = arith.constant 0 : index
    %c0_19 = arith.constant 0 : index
    %c0_20 = arith.constant 0 : index
    %11 = vector.load %arg2[%c0_18, %c0_19, %c0_20] : memref<3x1x4xf32, #tpu.memory_space<vmem>>, vector<1x1x4xf32>
    %12 = vector.shape_cast %11 : vector<1x1x4xf32> to vector<1x4xf32>
    %13 = vector.shape_cast %12 : vector<1x4xf32> to vector<1x1x4xf32>
    %c0_21 = arith.constant 0 : index
    %c7 = arith.constant 7 : index
    %c0_22 = arith.constant 0 : index
    %14 = vector.load %arg13[%c0_21, %c7, %c0_22] : memref<16x26x4xf32, #tpu.memory_space<vmem>>, vector<16x16x4xf32>
    %15 = vector.broadcast %13 : vector<1x1x4xf32> to vector<16x16x4xf32>
    %16 = arith.mulf %15, %14 : vector<16x16x4xf32>
    %c0_23 = arith.constant 0 : index
    %c0_24 = arith.constant 0 : index
    %c0_25 = arith.constant 0 : index
    %17 = vector.load %arg3[%c0_23, %c0_24, %c0_25] : memref<1x1x4xf32, #tpu.memory_space<vmem>>, vector<1x1x4xf32>
    %18 = vector.broadcast %17 : vector<1x1x4xf32> to vector<16x16x4xf32>
    %19 = arith.addf %16, %18 : vector<16x16x4xf32>
    %c1 = arith.constant 1 : index
    %c0_26 = arith.constant 0 : index
    %c0_27 = arith.constant 0 : index
    %20 = vector.load %arg2[%c1, %c0_26, %c0_27] : memref<3x1x4xf32, #tpu.memory_space<vmem>>, vector<1x1x4xf32>
    %21 = vector.shape_cast %20 : vector<1x1x4xf32> to vector<1x4xf32>
    %22 = vector.shape_cast %21 : vector<1x4xf32> to vector<1x1x4xf32>
    %c0_28 = arith.constant 0 : index
    %c8_29 = arith.constant 8 : index
    %c0_30 = arith.constant 0 : index
    %23 = vector.load %arg13[%c0_28, %c8_29, %c0_30] : memref<16x26x4xf32, #tpu.memory_space<vmem>>, vector<16x16x4xf32>
    %24 = vector.broadcast %22 : vector<1x1x4xf32> to vector<16x16x4xf32>
    %25 = arith.mulf %24, %23 : vector<16x16x4xf32>
    %26 = arith.addf %19, %25 : vector<16x16x4xf32>
    %c2 = arith.constant 2 : index
    %c0_31 = arith.constant 0 : index
    %c0_32 = arith.constant 0 : index
    %27 = vector.load %arg2[%c2, %c0_31, %c0_32] : memref<3x1x4xf32, #tpu.memory_space<vmem>>, vector<1x1x4xf32>
    %28 = vector.shape_cast %27 : vector<1x1x4xf32> to vector<1x4xf32>
    %29 = vector.shape_cast %28 : vector<1x4xf32> to vector<1x1x4xf32>
    %c0_33 = arith.constant 0 : index
    %c9 = arith.constant 9 : index
    %c0_34 = arith.constant 0 : index
    %30 = vector.load %arg13[%c0_33, %c9, %c0_34] : memref<16x26x4xf32, #tpu.memory_space<vmem>>, vector<16x16x4xf32>
    %31 = vector.broadcast %29 : vector<1x1x4xf32> to vector<16x16x4xf32>
    %32 = arith.mulf %31, %30 : vector<16x16x4xf32>
    %33 = arith.addf %26, %32 : vector<16x16x4xf32>
    %c2_35 = arith.constant 2 : index
    %c0_36 = arith.constant 0 : index
    %c0_37 = arith.constant 0 : index
    %34 = vector.load %arg14[%c2_35, %c0_36, %c0_37] : memref<20x16x4xf32, #tpu.memory_space<vmem>>, vector<16x16x4xf32>
    tpu.vector_store %arg14[%c2_35, %c0_36, %c0_37], %33 {strides = array<i32>} : memref<20x16x4xf32, #tpu.memory_space<vmem>>, vector<16x16x4xf32>,
    %c0_38 = arith.constant 0 : index
    %c0_39 = arith.constant 0 : index
    %c0_40 = arith.constant 0 : index
    %35 = vector.load %arg4[%c0_38, %c0_39, %c0_40] : memref<3x1x4xf32, #tpu.memory_space<vmem>>, vector<1x1x4xf32>
    %36 = vector.shape_cast %35 : vector<1x1x4xf32> to vector<1x4xf32>
    %37 = vector.shape_cast %36 : vector<1x4xf32> to vector<1x1x4xf32>
    %c1_41 = arith.constant 1 : index
    %c0_42 = arith.constant 0 : index
    %c0_43 = arith.constant 0 : index
    %38 = vector.load %arg14[%c1_41, %c0_42, %c0_43] : memref<20x16x4xf32, #tpu.memory_space<vmem>>, vector<16x16x4xf32>
    %39 = vector.broadcast %37 : vector<1x1x4xf32> to vector<16x16x4xf32>
    %40 = arith.mulf %39, %38 : vector<16x16x4xf32>
    %c0_44 = arith.constant 0 : index
    %c0_45 = arith.constant 0 : index
    %c0_46 = arith.constant 0 : index
    %41 = vector.load %arg5[%c0_44, %c0_45, %c0_46] : memref<1x1x4xf32, #tpu.memory_space<vmem>>, vector<1x1x4xf32>
    %42 = vector.broadcast %41 : vector<1x1x4xf32> to vector<16x16x4xf32>
    %43 = arith.addf %40, %42 : vector<16x16x4xf32>
    %c1_47 = arith.constant 1 : index
    %c0_48 = arith.constant 0 : index
    %c0_49 = arith.constant 0 : index
    %44 = vector.load %arg4[%c1_47, %c0_48, %c0_49] : memref<3x1x4xf32, #tpu.memory_space<vmem>>, vector<1x1x4xf32>
    %45 = vector.shape_cast %44 : vector<1x1x4xf32> to vector<1x4xf32>
    %46 = vector.shape_cast %45 : vector<1x4xf32> to vector<1x1x4xf32>
    %c2_50 = arith.constant 2 : index
    %c0_51 = arith.constant 0 : index
    %c0_52 = arith.constant 0 : index
    %47 = vector.load %arg14[%c2_50, %c0_51, %c0_52] : memref<20x16x4xf32, #tpu.memory_space<vmem>>, vector<16x16x4xf32>
    %48 = vector.broadcast %46 : vector<1x1x4xf32> to vector<16x16x4xf32>
    %49 = arith.mulf %48, %47 : vector<16x16x4xf32>
    %50 = arith.addf %43, %49 : vector<16x16x4xf32>
    %c2_53 = arith.constant 2 : index
    %c0_54 = arith.constant 0 : index
    %c0_55 = arith.constant 0 : index
    %51 = vector.load %arg4[%c2_53, %c0_54, %c0_55] : memref<3x1x4xf32, #tpu.memory_space<vmem>>, vector<1x1x4xf32>
    %52 = vector.shape_cast %51 : vector<1x1x4xf32> to vector<1x4xf32>
    %53 = vector.shape_cast %52 : vector<1x4xf32> to vector<1x1x4xf32>
    %c3 = arith.constant 3 : index
    %c0_56 = arith.constant 0 : index
    %c0_57 = arith.constant 0 : index
    %54 = vector.load %arg14[%c3, %c0_56, %c0_57] : memref<20x16x4xf32, #tpu.memory_space<vmem>>, vector<16x16x4xf32>
    %55 = vector.broadcast %53 : vector<1x1x4xf32> to vector<16x16x4xf32>
    %56 = arith.mulf %55, %54 : vector<16x16x4xf32>
    %57 = arith.addf %50, %56 : vector<16x16x4xf32>
    %c0_58 = arith.constant 0 : index
    %c8_59 = arith.constant 8 : index
    %c0_60 = arith.constant 0 : index
    %58 = vector.load %arg13[%c0_58, %c8_59, %c0_60] : memref<16x26x4xf32, #tpu.memory_space<vmem>>, vector<16x16x4xf32>
    tpu.vector_store %arg13[%c0_58, %c8_59, %c0_60], %57 {strides = array<i32>} : memref<16x26x4xf32, #tpu.memory_space<vmem>>, vector<16x16x4xf32>,
    %c0_61 = arith.constant 0 : index
    %c0_62 = arith.constant 0 : index
    %c0_63 = arith.constant 0 : index
    %59 = vector.load %arg6[%c0_61, %c0_62, %c0_63] : memref<3x1x4xf32, #tpu.memory_space<vmem>>, vector<1x1x4xf32>
    %60 = vector.shape_cast %59 : vector<1x1x4xf32> to vector<1x4xf32>
    %61 = vector.shape_cast %60 : vector<1x4xf32> to vector<1x1x4xf32>
    %c0_64 = arith.constant 0 : index
    %c6 = arith.constant 6 : index
    %c0_65 = arith.constant 0 : index
    %62 = vector.load %arg13[%c0_64, %c6, %c0_65] : memref<16x26x4xf32, #tpu.memory_space<vmem>>, vector<16x16x4xf32>
    %63 = vector.broadcast %61 : vector<1x1x4xf32> to vector<16x16x4xf32>
    %64 = arith.mulf %63, %62 : vector<16x16x4xf32>
    %c0_66 = arith.constant 0 : index
    %c0_67 = arith.constant 0 : index
    %c0_68 = arith.constant 0 : index
    %65 = vector.load %arg7[%c0_66, %c0_67, %c0_68] : memref<1x1x4xf32, #tpu.memory_space<vmem>>, vector<1x1x4xf32>
    %66 = vector.broadcast %65 : vector<1x1x4xf32> to vector<16x16x4xf32>
    %67 = arith.addf %64, %66 : vector<16x16x4xf32>
    %c1_69 = arith.constant 1 : index
    %c0_70 = arith.constant 0 : index
    %c0_71 = arith.constant 0 : index
    %68 = vector.load %arg6[%c1_69, %c0_70, %c0_71] : memref<3x1x4xf32, #tpu.memory_space<vmem>>, vector<1x1x4xf32>
    %69 = vector.shape_cast %68 : vector<1x1x4xf32> to vector<1x4xf32>
    %70 = vector.shape_cast %69 : vector<1x4xf32> to vector<1x1x4xf32>
    %c0_72 = arith.constant 0 : index
    %c8_73 = arith.constant 8 : index
    %c0_74 = arith.constant 0 : index
    %71 = vector.load %arg13[%c0_72, %c8_73, %c0_74] : memref<16x26x4xf32, #tpu.memory_space<vmem>>, vector<16x16x4xf32>
    %72 = vector.broadcast %70 : vector<1x1x4xf32> to vector<16x16x4xf32>
    %73 = arith.mulf %72, %71 : vector<16x16x4xf32>
    %74 = arith.addf %67, %73 : vector<16x16x4xf32>
    %c2_75 = arith.constant 2 : index
    %c0_76 = arith.constant 0 : index
    %c0_77 = arith.constant 0 : index
    %75 = vector.load %arg6[%c2_75, %c0_76, %c0_77] : memref<3x1x4xf32, #tpu.memory_space<vmem>>, vector<1x1x4xf32>
    %76 = vector.shape_cast %75 : vector<1x1x4xf32> to vector<1x4xf32>
    %77 = vector.shape_cast %76 : vector<1x4xf32> to vector<1x1x4xf32>
    %c0_78 = arith.constant 0 : index
    %c10 = arith.constant 10 : index
    %c0_79 = arith.constant 0 : index
    %78 = vector.load %arg13[%c0_78, %c10, %c0_79] : memref<16x26x4xf32, #tpu.memory_space<vmem>>, vector<16x16x4xf32>
    %79 = vector.broadcast %77 : vector<1x1x4xf32> to vector<16x16x4xf32>
    %80 = arith.mulf %79, %78 : vector<16x16x4xf32>
    %81 = arith.addf %74, %80 : vector<16x16x4xf32>
    %c2_80 = arith.constant 2 : index
    %c0_81 = arith.constant 0 : index
    %c0_82 = arith.constant 0 : index
    %82 = vector.load %arg14[%c2_80, %c0_81, %c0_82] : memref<20x16x4xf32, #tpu.memory_space<vmem>>, vector<16x16x4xf32>
    tpu.vector_store %arg14[%c2_80, %c0_81, %c0_82], %81 {strides = array<i32>} : memref<20x16x4xf32, #tpu.memory_space<vmem>>, vector<16x16x4xf32>,
    %c0_83 = arith.constant 0 : index
    %c0_84 = arith.constant 0 : index
    %c0_85 = arith.constant 0 : index
    %83 = vector.load %arg8[%c0_83, %c0_84, %c0_85] : memref<3x1x4xf32, #tpu.memory_space<vmem>>, vector<1x1x4xf32>
    %84 = vector.shape_cast %83 : vector<1x1x4xf32> to vector<1x4xf32>
    %85 = vector.shape_cast %84 : vector<1x4xf32> to vector<1x1x4xf32>
    %c0_86 = arith.constant 0 : index
    %c0_87 = arith.constant 0 : index
    %c0_88 = arith.constant 0 : index
    %86 = vector.load %arg14[%c0_86, %c0_87, %c0_88] : memref<20x16x4xf32, #tpu.memory_space<vmem>>, vector<16x16x4xf32>
    %87 = vector.broadcast %85 : vector<1x1x4xf32> to vector<16x16x4xf32>
    %88 = arith.mulf %87, %86 : vector<16x16x4xf32>
    %c0_89 = arith.constant 0 : index
    %c0_90 = arith.constant 0 : index
    %c0_91 = arith.constant 0 : index
    %89 = vector.load %arg9[%c0_89, %c0_90, %c0_91] : memref<1x1x4xf32, #tpu.memory_space<vmem>>, vector<1x1x4xf32>
    %90 = vector.broadcast %89 : vector<1x1x4xf32> to vector<16x16x4xf32>
    %91 = arith.addf %88, %90 : vector<16x16x4xf32>
    %c1_92 = arith.constant 1 : index
    %c0_93 = arith.constant 0 : index
    %c0_94 = arith.constant 0 : index
    %92 = vector.load %arg8[%c1_92, %c0_93, %c0_94] : memref<3x1x4xf32, #tpu.memory_space<vmem>>, vector<1x1x4xf32>
    %93 = vector.shape_cast %92 : vector<1x1x4xf32> to vector<1x4xf32>
    %94 = vector.shape_cast %93 : vector<1x4xf32> to vector<1x1x4xf32>
    %c2_95 = arith.constant 2 : index
    %c0_96 = arith.constant 0 : index
    %c0_97 = arith.constant 0 : index
    %95 = vector.load %arg14[%c2_95, %c0_96, %c0_97] : memref<20x16x4xf32, #tpu.memory_space<vmem>>, vector<16x16x4xf32>
    %96 = vector.broadcast %94 : vector<1x1x4xf32> to vector<16x16x4xf32>
    %97 = arith.mulf %96, %95 : vector<16x16x4xf32>
    %98 = arith.addf %91, %97 : vector<16x16x4xf32>
    %c2_98 = arith.constant 2 : index
    %c0_99 = arith.constant 0 : index
    %c0_100 = arith.constant 0 : index
    %99 = vector.load %arg8[%c2_98, %c0_99, %c0_100] : memref<3x1x4xf32, #tpu.memory_space<vmem>>, vector<1x1x4xf32>
    %100 = vector.shape_cast %99 : vector<1x1x4xf32> to vector<1x4xf32>
    %101 = vector.shape_cast %100 : vector<1x4xf32> to vector<1x1x4xf32>
    %c4 = arith.constant 4 : index
    %c0_101 = arith.constant 0 : index
    %c0_102 = arith.constant 0 : index
    %102 = vector.load %arg14[%c4, %c0_101, %c0_102] : memref<20x16x4xf32, #tpu.memory_space<vmem>>, vector<16x16x4xf32>
    %103 = vector.broadcast %101 : vector<1x1x4xf32> to vector<16x16x4xf32>
    %104 = arith.mulf %103, %102 : vector<16x16x4xf32>
    %105 = arith.addf %98, %104 : vector<16x16x4xf32>
    %106 = vector.shape_cast %105 : vector<16x16x4xf32> to vector<256x4xf32>
    %c0_103 = arith.constant 0 : index
    %c0_104 = arith.constant 0 : index
    %107 = vector.load %arg10[%c0_103, %c0_104] : memref<4x4xf32, #tpu.memory_space<vmem>>, vector<4x4xf32>
    %cst_105 = arith.constant dense<0.000000e+00> : vector<256x4xf32>
    %108 = tpu.matmul %106, %107, %cst_105 {dimension_numbers = #tpu.dot_dimension_numbers<[1], [0], [0], [1], [0, 0, 1, 1], [], []>} : vector<256x4xf32>, vector<4x4xf32>, vector<256x4xf32> -> vector<256x4xf32>
    %109 = vector.shape_cast %108 : vector<256x4xf32> to vector<16x16x4xf32>
    %c0_106 = arith.constant 0 : index
    %c0_107 = arith.constant 0 : index
    %c0_108 = arith.constant 0 : index
    %110 = vector.load %arg11[%c0_106, %c0_107, %c0_108] : memref<1x1x4xf32, #tpu.memory_space<vmem>>, vector<1x1x4xf32>
    %111 = vector.broadcast %110 : vector<1x1x4xf32> to vector<16x16x4xf32>
    %112 = arith.addf %109, %111 : vector<16x16x4xf32>
    %c0_109 = arith.constant 0 : index
    %c0_110 = arith.constant 0 : index
    %c0_111 = arith.constant 0 : index
    %c0_112 = arith.constant 0 : index
    %113 = vector.load %arg1[%c0_109, %c0_110, %c0_111, %c0_112] : memref<1x16x16x4xf32, #tpu.memory_space<vmem>>, vector<1x16x16x4xf32>
    %114 = vector.shape_cast %113 : vector<1x16x16x4xf32> to vector<16x16x4xf32>
    %115 = arith.mulf %114, %112 : vector<16x16x4xf32>
    %c0_113 = arith.constant 0 : index
    %c0_114 = arith.constant 0 : index
    %c0_115 = arith.constant 0 : index
    %c0_116 = arith.constant 0 : index
    %116 = vector.load %arg12[%c0_113, %c0_114, %c0_115, %c0_116] : memref<1x16x16x4xf32, #tpu.memory_space<vmem>>, vector<1x16x16x4xf32>
    %117 = vector.shape_cast %116 : vector<1x16x16x4xf32> to vector<16x16x4xf32>
    %118 = vector.shape_cast %115 : vector<16x16x4xf32> to vector<1x16x16x4xf32>
    tpu.vector_store %arg12[%c0_113, %c0_114, %c0_115, %c0_116], %118 {strides = array<i32>} : memref<1x16x16x4xf32, #tpu.memory_space<vmem>>, vector<1x16x16x4xf32>,
    return
  }
  func.func @transform_0(%arg0: i32) -> (i32, i32, i32, i32) {
    %c0_i32 = arith.constant 0 : i32
    %c0_i32_0 = arith.constant 0 : i32
    %c0_i32_1 = arith.constant 0 : i32
    %c0_i32_2 = arith.constant 0 : i32
    return %arg0, %c0_i32, %c0_i32_0, %c0_i32_1 : i32, i32, i32, i32
  }
  func.func @transform_1(%arg0: i32) -> (i32, i32, i32) {
    %c0_i32 = arith.constant 0 : i32
    %c0_i32_0 = arith.constant 0 : i32
    %c0_i32_1 = arith.constant 0 : i32
    %c0_i32_2 = arith.constant 0 : i32
    return %c0_i32, %c0_i32_0, %c0_i32_1 : i32, i32, i32
  }
  func.func @transform_2(%arg0: i32) -> (i32, i32, i32) {
    %c0_i32 = arith.constant 0 : i32
    %c0_i32_0 = arith.constant 0 : i32
    %c0_i32_1 = arith.constant 0 : i32
    %c0_i32_2 = arith.constant 0 : i32
    return %c0_i32, %c0_i32_0, %c0_i32_1 : i32, i32, i32
  }
  func.func @transform_3(%arg0: i32) -> (i32, i32, i32) {
    %c0_i32 = arith.constant 0 : i32
    %c0_i32_0 = arith.constant 0 : i32
    %c0_i32_1 = arith.constant 0 : i32
    %c0_i32_2 = arith.constant 0 : i32
    return %c0_i32, %c0_i32_0, %c0_i32_1 : i32, i32, i32
  }
  func.func @transform_4(%arg0: i32) -> (i32, i32, i32) {
    %c0_i32 = arith.constant 0 : i32
    %c0_i32_0 = arith.constant 0 : i32
    %c0_i32_1 = arith.constant 0 : i32
    %c0_i32_2 = arith.constant 0 : i32
    return %c0_i32, %c0_i32_0, %c0_i32_1 : i32, i32, i32
  }
  func.func @transform_5(%arg0: i32) -> (i32, i32, i32) {
    %c0_i32 = arith.constant 0 : i32
    %c0_i32_0 = arith.constant 0 : i32
    %c0_i32_1 = arith.constant 0 : i32
    %c0_i32_2 = arith.constant 0 : i32
    return %c0_i32, %c0_i32_0, %c0_i32_1 : i32, i32, i32
  }
  func.func @transform_6(%arg0: i32) -> (i32, i32, i32) {
    %c0_i32 = arith.constant 0 : i32
    %c0_i32_0 = arith.constant 0 : i32
    %c0_i32_1 = arith.constant 0 : i32
    %c0_i32_2 = arith.constant 0 : i32
    return %c0_i32, %c0_i32_0, %c0_i32_1 : i32, i32, i32
  }
  func.func @transform_7(%arg0: i32) -> (i32, i32, i32) {
    %c0_i32 = arith.constant 0 : i32
    %c0_i32_0 = arith.constant 0 : i32
    %c0_i32_1 = arith.constant 0 : i32
    %c0_i32_2 = arith.constant 0 : i32
    return %c0_i32, %c0_i32_0, %c0_i32_1 : i32, i32, i32
  }
  func.func @transform_8(%arg0: i32) -> (i32, i32, i32) {
    %c0_i32 = arith.constant 0 : i32
    %c0_i32_0 = arith.constant 0 : i32
    %c0_i32_1 = arith.constant 0 : i32
    %c0_i32_2 = arith.constant 0 : i32
    return %c0_i32, %c0_i32_0, %c0_i32_1 : i32, i32, i32
  }
  func.func @transform_9(%arg0: i32) -> (i32, i32) {
    %c0_i32 = arith.constant 0 : i32
    %c0_i32_0 = arith.constant 0 : i32
    %c0_i32_1 = arith.constant 0 : i32
    return %c0_i32, %c0_i32_0 : i32, i32
  }
  func.func @transform_10(%arg0: i32) -> (i32, i32, i32) {
    %c0_i32 = arith.constant 0 : i32
    %c0_i32_0 = arith.constant 0 : i32
    %c0_i32_1 = arith.constant 0 : i32
    %c0_i32_2 = arith.constant 0 : i32
    return %c0_i32, %c0_i32_0, %c0_i32_1 : i32, i32, i32
  }
  func.func @transform_11(%arg0: i32) -> (i32, i32, i32, i32) {
    %c0_i32 = arith.constant 0 : i32
    %c0_i32_0 = arith.constant 0 : i32
    %c0_i32_1 = arith.constant 0 : i32
    %c0_i32_2 = arith.constant 0 : i32
    return %arg0, %c0_i32, %c0_i32_0, %c0_i32_1 : i32, i32, i32, i32
  }
}

</mosaic_0001>

<llo_original>
// kernel: tpu_custom_call.1
$region0: #{tpu_custom_call.1}
  #allocation0 [shape = 'u32[]', space=smem, size = 0x4, offset = 0x4, fixed_abs, tag = 'smem constant byte address 0x4 - core index']
  #allocation1 [shape = 'u32[144,128]{1,0:T(1,128)}', space=vmem, size = 0x12000, scoped, tag = 'internal scratch']
  #allocation2 [shape = 'f32[16,26,4]{2,1,0:T(8,128)}', space=vmem, size = 0x40000, scoped, tag = 'scratch operand']
  #allocation3 [shape = 'f32[20,16,4]{2,1,0:T(8,128)}', space=vmem, size = 0x28000, scoped, tag = 'scratch operand']
  %s0 = inlined_call_operand.vmem [shape: f32[2,16,16,4], index: 0, kind: input, shape index: {}]
  %s1 = inlined_call_operand.vmem [shape: f32[3,1,4], index: 1, kind: input, shape index: {}]
  %s2 = inlined_call_operand.vmem [shape: f32[1,1,4], index: 2, kind: input, shape index: {}]
  %s3 = inlined_call_operand.vmem [shape: f32[3,1,4], index: 3, kind: input, shape index: {}]
  %s4 = inlined_call_operand.vmem [shape: f32[1,1,4], index: 4, kind: input, shape index: {}]
  %s5 = inlined_call_operand.vmem [shape: f32[3,1,4], index: 5, kind: input, shape index: {}]
  %s6 = inlined_call_operand.vmem [shape: f32[1,1,4], index: 6, kind: input, shape index: {}]
  %s7 = inlined_call_operand.vmem [shape: f32[3,1,4], index: 7, kind: input, shape index: {}]
  %s8 = inlined_call_operand.vmem [shape: f32[1,1,4], index: 8, kind: input, shape index: {}]
  %s9 = inlined_call_operand.vmem [shape: f32[4,4], index: 9, kind: input, shape index: {}]
  %s10 = inlined_call_operand.vmem [shape: f32[1,1,4], index: 10, kind: input, shape index: {}]
  %s11 = inlined_call_operand.vmem [shape: f32[2,16,16,4], index: 11, kind: output, shape index: {}]
  %s12 = sld [smem:[#allocation0]]
  $region77: #{tpu_custom_call.1} parent=0
    _
  %s14 = ssub.s32 1, %s12
  %s15 = scalar_select 0, %s14, %s12
  loop: start=0, step=1, limit=4
  $region2: #{tpu_custom_call.1} parent=0 // loop_pre_header
    _
  $region3: #{tpu_custom_call.1} parent=0 // loop_header
    %s17 = sphi 0, %s21
    %p18 = scmp.ge.s32.totalorder %s17, 4
    %s27 = sphi 0, %s29
    %s30 = sphi 0, %s27
    %s31 = sphi 0, %s30
    %s47 = sphi 0, %s31
    %s51 = sphi 0, %s51
    %s53 = sphi 0, %s51
    %s54 = sphi 0, %s53
    %s68 = sphi 0, %s54
    %s72 = sphi 0, %s72
    %s74 = sphi 0, %s72
    %s75 = sphi 0, %s74
    %s89 = sphi 0, %s75
    %s93 = sphi 0, %s93
    %s95 = sphi 0, %s93
    %s96 = sphi 0, %s95
    %s110 = sphi 0, %s96
    %s114 = sphi 0, %s114
    %s116 = sphi 0, %s114
    %s117 = sphi 0, %s116
    %s131 = sphi 0, %s117
    %s135 = sphi 0, %s135
    %s137 = sphi 0, %s135
    %s138 = sphi 0, %s137
    %s152 = sphi 0, %s138
    %s156 = sphi 0, %s156
    %s158 = sphi 0, %s156
    %s159 = sphi 0, %s158
    %s173 = sphi 0, %s159
    %s177 = sphi 0, %s177
    %s179 = sphi 0, %s177
    %s180 = sphi 0, %s179
    %s194 = sphi 0, %s180
    %s198 = sphi 0, %s198
    %s200 = sphi 0, %s198
    %s201 = sphi 0, %s200
    %s215 = sphi 0, %s201
    %s219 = sphi 0, %s219
    %s221 = sphi 0, %s219
    %s222 = sphi 0, %s221
    %s236 = sphi 0, %s222
    %s240 = sphi 0, %s240
    %s242 = sphi 0, %s240
    %s243 = sphi 0, %s242
    %s257 = sphi 0, %s243
    %s263 = sphi 0, %s265
    %s266 = sphi 0, %s263
    %s267 = sphi 0, %s266
    %s283 = sphi 0, %s267
  $region4: #{tpu_custom_call.1} parent=0 // loop_header_branch
    %20 = sbr.rel (%p18) target = $region8
  $region5: #{tpu_custom_call.1} parent=0 // loop_body
    %s22 = ssub.s32 %s17, 1
    %s23 = ssub.s32 %s17, 2
    %s24 = sadd.s32 %s17, 1
    %s25 = ssub.s32 %s17, %s24
    %p26 = scmp.eq.s32.totalorder %s25, 0
    %s28 = sadd.s32 %s27, 1
    %s29 = scalar_select %p26, %s27, %s28
    %p32 = pneg %p26
    %p33 = scmp.eq.s32.totalorder %s17, 1
    %p34 = por %p32, %p33
    %p35 = scmp.ne.s32.totalorder %s27, %s30
    %p36 = scmp.eq.s32.totalorder %s17, 0
    %p37 = por %p35, %p36
    %p38 = scmp.ne.s32.totalorder %s27, %s30
    %p39 = scmp.eq.s32.totalorder %s22, 1
    %p40 = por %p38, %p39
    %p41 = scmp.ne.s32.totalorder %s30, %s31
    %p42 = scmp.eq.s32.totalorder %s22, 0
    %p43 = por %p41, %p42
    %p44 = scmp.ne.s32.totalorder %s30, %s31
    %p45 = scmp.eq.s32.totalorder %s23, 1
    %p46 = por %p44, %p45
    %p48 = scmp.ne.s32.totalorder %s31, %s47
    %p49 = scmp.eq.s32.totalorder %s23, 0
    %p50 = por %p48, %p49
    %s52 = sadd.s32 %s51, 1
    %p55 = scmp.eq.s32.totalorder %s17, 1
    %p56 = scmp.ne.s32.totalorder %s51, %s53
    %p57 = scmp.eq.s32.totalorder %s17, 0
    %p58 = por %p56, %p57
    %p59 = scmp.ne.s32.totalorder %s51, %s53
    %p60 = scmp.eq.s32.totalorder %s22, 1
    %p61 = por %p59, %p60
    %p62 = scmp.ne.s32.totalorder %s53, %s54
    %p63 = scmp.eq.s32.totalorder %s22, 0
    %p64 = por %p62, %p63
    %p65 = scmp.ne.s32.totalorder %s53, %s54
    %p66 = scmp.eq.s32.totalorder %s23, 1
    %p67 = por %p65, %p66
    %p69 = scmp.ne.s32.totalorder %s54, %s68
    %p70 = scmp.eq.s32.totalorder %s23, 0
    %p71 = por %p69, %p70
    %s73 = sadd.s32 %s72, 1
    %p76 = scmp.eq.s32.totalorder %s17, 1
    %p77 = scmp.ne.s32.totalorder %s72, %s74
    %p78 = scmp.eq.s32.totalorder %s17, 0
    %p79 = por %p77, %p78
    %p80 = scmp.ne.s32.totalorder %s72, %s74
    %p81 = scmp.eq.s32.totalorder %s22, 1
    %p82 = por %p80, %p81
    %p83 = scmp.ne.s32.totalorder %s74, %s75
    %p84 = scmp.eq.s32.totalorder %s22, 0
    %p85 = por %p83, %p84
    %p86 = scmp.ne.s32.totalorder %s74, %s75
    %p87 = scmp.eq.s32.totalorder %s23, 1
    %p88 = por %p86, %p87
    %p90 = scmp.ne.s32.totalorder %s75, %s89
    %p91 = scmp.eq.s32.totalorder %s23, 0
    %p92 = por %p90, %p91
    %s94 = sadd.s32 %s93, 1
    %p97 = scmp.eq.s32.totalorder %s17, 1
    %p98 = scmp.ne.s32.totalorder %s93, %s95
    %p99 = scmp.eq.s32.totalorder %s17, 0
    %p100 = por %p98, %p99
    %p101 = scmp.ne.s32.totalorder %s93, %s95
    %p102 = scmp.eq.s32.totalorder %s22, 1
    %p103 = por %p101, %p102
    %p104 = scmp.ne.s32.totalorder %s95, %s96
    %p105 = scmp.eq.s32.totalorder %s22, 0
    %p106 = por %p104, %p105
    %p107 = scmp.ne.s32.totalorder %s95, %s96
    %p108 = scmp.eq.s32.totalorder %s23, 1
    %p109 = por %p107, %p108
    %p111 = scmp.ne.s32.totalorder %s96, %s110
    %p112 = scmp.eq.s32.totalorder %s23, 0
    %p113 = por %p111, %p112
    %s115 = sadd.s32 %s114, 1
    %p118 = scmp.eq.s32.totalorder %s17, 1
    %p119 = scmp.ne.s32.totalorder %s114, %s116
    %p120 = scmp.eq.s32.totalorder %s17, 0
    %p121 = por %p119, %p120
    %p122 = scmp.ne.s32.totalorder %s114, %s116
    %p123 = scmp.eq.s32.totalorder %s22, 1
    %p124 = por %p122, %p123
    %p125 = scmp.ne.s32.totalorder %s116, %s117
    %p126 = scmp.eq.s32.totalorder %s22, 0
    %p127 = por %p125, %p126
    %p128 = scmp.ne.s32.totalorder %s116, %s117
    %p129 = scmp.eq.s32.totalorder %s23, 1
    %p130 = por %p128, %p129
    %p132 = scmp.ne.s32.totalorder %s117, %s131
    %p133 = scmp.eq.s32.totalorder %s23, 0
    %p134 = por %p132, %p133
    %s136 = sadd.s32 %s135, 1
    %p139 = scmp.eq.s32.totalorder %s17, 1
    %p140 = scmp.ne.s32.totalorder %s135, %s137
    %p141 = scmp.eq.s32.totalorder %s17, 0
    %p142 = por %p140, %p141
    %p143 = scmp.ne.s32.totalorder %s135, %s137
    %p144 = scmp.eq.s32.totalorder %s22, 1
    %p145 = por %p143, %p144
    %p146 = scmp.ne.s32.totalorder %s137, %s138
    %p147 = scmp.eq.s32.totalorder %s22, 0
    %p148 = por %p146, %p147
    %p149 = scmp.ne.s32.totalorder %s137, %s138
    %p150 = scmp.eq.s32.totalorder %s23, 1
    %p151 = por %p149, %p150
    %p153 = scmp.ne.s32.totalorder %s138, %s152
    %p154 = scmp.eq.s32.totalorder %s23, 0
    %p155 = por %p153, %p154
    %s157 = sadd.s32 %s156, 1
    %p160 = scmp.eq.s32.totalorder %s17, 1
    %p161 = scmp.ne.s32.totalorder %s156, %s158
    %p162 = scmp.eq.s32.totalorder %s17, 0
    %p163 = por %p161, %p162
    %p164 = scmp.ne.s32.totalorder %s156, %s158
    %p165 = scmp.eq.s32.totalorder %s22, 1
    %p166 = por %p164, %p165
    %p167 = scmp.ne.s32.totalorder %s158, %s159
    %p168 = scmp.eq.s32.totalorder %s22, 0
    %p169 = por %p167, %p168
    %p170 = scmp.ne.s32.totalorder %s158, %s159
    %p171 = scmp.eq.s32.totalorder %s23, 1
    %p172 = por %p170, %p171
    %p174 = scmp.ne.s32.totalorder %s159, %s173
    %p175 = scmp.eq.s32.totalorder %s23, 0
    %p176 = por %p174, %p175
    %s178 = sadd.s32 %s177, 1
    %p181 = scmp.eq.s32.totalorder %s17, 1
    %p182 = scmp.ne.s32.totalorder %s177, %s179
    %p183 = scmp.eq.s32.totalorder %s17, 0
    %p184 = por %p182, %p183
    %p185 = scmp.ne.s32.totalorder %s177, %s179
    %p186 = scmp.eq.s32.totalorder %s22, 1
    %p187 = por %p185, %p186
    %p188 = scmp.ne.s32.totalorder %s179, %s180
    %p189 = scmp.eq.s32.totalorder %s22, 0
    %p190 = por %p188, %p189
    %p191 = scmp.ne.s32.totalorder %s179, %s180
    %p192 = scmp.eq.s32.totalorder %s23, 1
    %p193 = por %p191, %p192
    %p195 = scmp.ne.s32.totalorder %s180, %s194
    %p196 = scmp.eq.s32.totalorder %s23, 0
    %p197 = por %p195, %p196
    %s199 = sadd.s32 %s198, 1
    %p202 = scmp.eq.s32.totalorder %s17, 1
    %p203 = scmp.ne.s32.totalorder %s198, %s200
    %p204 = scmp.eq.s32.totalorder %s17, 0
    %p205 = por %p203, %p204
    %p206 = scmp.ne.s32.totalorder %s198, %s200
    %p207 = scmp.eq.s32.totalorder %s22, 1
    %p208 = por %p206, %p207
    %p209 = scmp.ne.s32.totalorder %s200, %s201
    %p210 = scmp.eq.s32.totalorder %s22, 0
    %p211 = por %p209, %p210
    %p212 = scmp.ne.s32.totalorder %s200, %s201
    %p213 = scmp.eq.s32.totalorder %s23, 1
    %p214 = por %p212, %p213
    %p216 = scmp.ne.s32.totalorder %s201, %s215
    %p217 = scmp.eq.s32.totalorder %s23, 0
    %p218 = por %p216, %p217
    %s220 = sadd.s32 %s219, 1
    %p223 = scmp.eq.s32.totalorder %s17, 1
    %p224 = scmp.ne.s32.totalorder %s219, %s221
    %p225 = scmp.eq.s32.totalorder %s17, 0
    %p226 = por %p224, %p225
    %p227 = scmp.ne.s32.totalorder %s219, %s221
    %p228 = scmp.eq.s32.totalorder %s22, 1
    %p229 = por %p227, %p228
    %p230 = scmp.ne.s32.totalorder %s221, %s222
    %p231 = scmp.eq.s32.totalorder %s22, 0
    %p232 = por %p230, %p231
    %p233 = scmp.ne.s32.totalorder %s221, %s222
    %p234 = scmp.eq.s32.totalorder %s23, 1
    %p235 = por %p233, %p234
    %p237 = scmp.ne.s32.totalorder %s222, %s236
    %p238 = scmp.eq.s32.totalorder %s23, 0
    %p239 = por %p237, %p238
    %s241 = sadd.s32 %s240, 1
    %p244 = scmp.eq.s32.totalorder %s17, 1
    %p245 = scmp.ne.s32.totalorder %s240, %s242
    %p246 = scmp.eq.s32.totalorder %s17, 0
    %p247 = por %p245, %p246
    %p248 = scmp.ne.s32.totalorder %s240, %s242
    %p249 = scmp.eq.s32.totalorder %s22, 1
    %p250 = por %p248, %p249
    %p251 = scmp.ne.s32.totalorder %s242, %s243
    %p252 = scmp.eq.s32.totalorder %s22, 0
    %p253 = por %p251, %p252
    %p254 = scmp.ne.s32.totalorder %s242, %s243
    %p255 = scmp.eq.s32.totalorder %s23, 1
    %p256 = por %p254, %p255
    %p258 = scmp.ne.s32.totalorder %s243, %s257
    %p259 = scmp.eq.s32.totalorder %s23, 0
    %p260 = por %p258, %p259
    %s261 = ssub.s32 %s17, %s24
    %p262 = scmp.eq.s32.totalorder %s261, 0
    %s264 = sadd.s32 %s263, 1
    %s265 = scalar_select %p262, %s263, %s264
    %p268 = pneg %p262
    %p269 = scmp.eq.s32.totalorder %s17, 1
    %p270 = por %p268, %p269
    %p271 = scmp.ne.s32.totalorder %s263, %s266
    %p272 = scmp.eq.s32.totalorder %s17, 0
    %p273 = por %p271, %p272
    %p274 = scmp.ne.s32.totalorder %s263, %s266
    %p275 = scmp.eq.s32.totalorder %s22, 1
    %p276 = por %p274, %p275
    %p277 = scmp.ne.s32.totalorder %s266, %s267
    %p278 = scmp.eq.s32.totalorder %s22, 0
    %p279 = por %p277, %p278
    %p280 = scmp.ne.s32.totalorder %s266, %s267
    %p281 = scmp.eq.s32.totalorder %s23, 1
    %p282 = por %p280, %p281
    %p284 = scmp.ne.s32.totalorder %s267, %s283
    %p285 = scmp.eq.s32.totalorder %s23, 0
    %p286 = por %p284, %p285
    %p287 = scmp.le.s32.totalorder 1, %s17
    %p288 = scmp.lt.s32.totalorder %s17, 3
    %p289 = pnand %p287, %p288
    %p290 = pneg %p289
    // Predicated region
    $region9: #{tpu_custom_call.1} parent=5 // pred_check
      _
    $region10: #{tpu_custom_call.1} parent=5 // pred_check_branch
      %292 = sbr.rel (%p289) target = $region12
    $region11: #{tpu_custom_call.1} parent=5 // pred_region
      %s293 = ssub.s32 %s17, 1
      // Predicated region
      $region13: #{tpu_custom_call.1} parent=11 // pred_check
        %p294 = pneg %p64
      $region14: #{tpu_custom_call.1} parent=11 // pred_check_branch
        %296 = sbr.rel (%p294) target = $region16
      $region15: #{tpu_custom_call.1} parent=11 // pred_region
        _
      $region16: #{tpu_custom_call.1} parent=11 // pred_fallthru
        _
      // Predicated region
      $region17: #{tpu_custom_call.1} parent=11 // pred_check
        %p297 = pneg %p85
      $region18: #{tpu_custom_call.1} parent=11 // pred_check_branch
        %299 = sbr.rel (%p297) target = $region20
      $region19: #{tpu_custom_call.1} parent=11 // pred_region
        _
      $region20: #{tpu_custom_call.1} parent=11 // pred_fallthru
        _
      // Predicated region
      $region21: #{tpu_custom_call.1} parent=11 // pred_check
        %p300 = pneg %p106
      $region22: #{tpu_custom_call.1} parent=11 // pred_check_branch
        %302 = sbr.rel (%p300) target = $region24
      $region23: #{tpu_custom_call.1} parent=11 // pred_region
        _
      $region24: #{tpu_custom_call.1} parent=11 // pred_fallthru
        _
      // Predicated region
      $region25: #{tpu_custom_call.1} parent=11 // pred_check
        %p303 = pneg %p127
      $region26: #{tpu_custom_call.1} parent=11 // pred_check_branch
        %305 = sbr.rel (%p303) target = $region28
      $region27: #{tpu_custom_call.1} parent=11 // pred_region
        _
      $region28: #{tpu_custom_call.1} parent=11 // pred_fallthru
        _
      // Predicated region
      $region29: #{tpu_custom_call.1} parent=11 // pred_check
        %p306 = pneg %p148
      $region30: #{tpu_custom_call.1} parent=11 // pred_check_branch
        %308 = sbr.rel (%p306) target = $region32
      $region31: #{tpu_custom_call.1} parent=11 // pred_region
        _
      $region32: #{tpu_custom_call.1} parent=11 // pred_fallthru
        _
      // Predicated region
      $region33: #{tpu_custom_call.1} parent=11 // pred_check
        %p309 = pneg %p169
      $region34: #{tpu_custom_call.1} parent=11 // pred_check_branch
        %311 = sbr.rel (%p309) target = $region36
      $region35: #{tpu_custom_call.1} parent=11 // pred_region
        _
      $region36: #{tpu_custom_call.1} parent=11 // pred_fallthru
        _
      // Predicated region
      $region37: #{tpu_custom_call.1} parent=11 // pred_check
        %p312 = pneg %p190
      $region38: #{tpu_custom_call.1} parent=11 // pred_check_branch
        %314 = sbr.rel (%p312) target = $region40
      $region39: #{tpu_custom_call.1} parent=11 // pred_region
        _
      $region40: #{tpu_custom_call.1} parent=11 // pred_fallthru
        _
      // Predicated region
      $region41: #{tpu_custom_call.1} parent=11 // pred_check
        %p315 = pneg %p211
      $region42: #{tpu_custom_call.1} parent=11 // pred_check_branch
        %317 = sbr.rel (%p315) target = $region44
      $region43: #{tpu_custom_call.1} parent=11 // pred_region
        _
      $region44: #{tpu_custom_call.1} parent=11 // pred_fallthru
        _
      // Predicated region
      $region45: #{tpu_custom_call.1} parent=11 // pred_check
        %p318 = pneg %p232
      $region46: #{tpu_custom_call.1} parent=11 // pred_check_branch
        %320 = sbr.rel (%p318) target = $region48
      $region47: #{tpu_custom_call.1} parent=11 // pred_region
        _
      $region48: #{tpu_custom_call.1} parent=11 // pred_fallthru
        _
      // Predicated region
      $region49: #{tpu_custom_call.1} parent=11 // pred_check
        %p321 = pneg %p253
      $region50: #{tpu_custom_call.1} parent=11 // pred_check_branch
        %323 = sbr.rel (%p321) target = $region52
      $region51: #{tpu_custom_call.1} parent=11 // pred_region
        _
      $region52: #{tpu_custom_call.1} parent=11 // pred_fallthru
        _
    $region12: #{tpu_custom_call.1} parent=5 // pred_fallthru
      _
    %p324 = scmp.lt.s32.totalorder %s17, 2
    // Predicated region
    $region53: #{tpu_custom_call.1} parent=5 // pred_check
      %p325 = pneg %p324
    $region54: #{tpu_custom_call.1} parent=5 // pred_check_branch
      %327 = sbr.rel (%p325) target = $region56
    $region55: #{tpu_custom_call.1} parent=5 // pred_region
      // Predicated region
      $region57: #{tpu_custom_call.1} parent=55 // pred_check
        %p328 = pneg %p37
      $region58: #{tpu_custom_call.1} parent=55 // pred_check_branch
        %330 = sbr.rel (%p328) target = $region60
      $region59: #{tpu_custom_call.1} parent=55 // pred_region
        %p331 = scmp.lt.s32.totalorder %s17, 1
        %s332 = scalar_select %p331, %s17, 1
        %s333 = smul.addr %s332, 32
        %s334 = smul.addr %s333, 8
        %s335 = scalar_lea.vmem %s0, %s334
      $region60: #{tpu_custom_call.1} parent=55 // pred_fallthru
        _
    $region56: #{tpu_custom_call.1} parent=5 // pred_fallthru
      _
    %p336 = scmp.le.s32.totalorder 1, %s17
    %p337 = scmp.lt.s32.totalorder %s17, 3
    %p338 = pnand %p336, %p337
    %p339 = pneg %p338
    // Predicated region
    $region61: #{tpu_custom_call.1} parent=5 // pred_check
      _
    $region62: #{tpu_custom_call.1} parent=5 // pred_check_branch
      %341 = sbr.rel (%p338) target = $region64
    $region63: #{tpu_custom_call.1} parent=5 // pred_region
      %s342 = ssub.s32 %s17, 1
      %p343 = scmp.lt.s32.totalorder %s22, 1
      %s344 = scalar_select %p343, %s22, 1
      %s345 = smul.addr %s344, 32
      %s346 = smul.addr %s345, 8
      %s347 = scalar_lea.vmem %s0, %s346
      %p348 = pneg %p43
      %p349 = pneg %p40
      %p350 = pneg %p64
      %p351 = pneg %p61
      %p352 = pneg %p85
      %p353 = pneg %p82
      %p354 = pneg %p106
      %p355 = pneg %p103
      %p356 = pneg %p127
      %p357 = pneg %p124
      %p358 = pneg %p148
      %p359 = pneg %p145
      %p360 = pneg %p169
      %p361 = pneg %p166
      %p362 = pneg %p190
      %p363 = pneg %p187
      %p364 = pneg %p211
      %p365 = pneg %p208
      %p366 = pneg %p232
      %p367 = pneg %p229
      %p368 = pneg %p253
      %p369 = pneg %p250
      %p370 = pneg %p279
      %p371 = pneg %p276
      %p372 = scmp.lt.s32.totalorder %s22, 1
      %s373 = scalar_select %p372, %s22, 1
      %s374 = smul.addr %s373, 32
      %s375 = smul.addr %s374, 8
      %s376 = scalar_lea.vmem %s11, %s375
      %p377 = scmp.lt.s32.totalorder %s22, 1
      %s378 = scalar_select %p377, %s22, 1
      %s379 = smul.addr %s378, 32
      %s380 = smul.addr %s379, 8
      %s381 = scalar_lea.vmem %s0, %s380
      %p382 = scmp.lt.s32.totalorder %s22, 1
      %s383 = scalar_select %p382, %s22, 1
      %s384 = smul.addr %s383, 32
      %s385 = smul.addr %s384, 8
      %s386 = scalar_lea.vmem %s11, %s385
      %vm387 = vcmask 31744
      %388 = vst.msk [vmem:[#allocation2] sm:$0xff] %vm387, 0.0
      %389 = vst.msk [vmem:[#allocation2 + $0x20] sm:$0xff] %vm387, 0.0
      %390 = vst.msk [vmem:[#allocation2 + $0x40] sm:$0xff] %vm387, 0.0
      %391 = vst.msk [vmem:[#allocation2 + $0x60] sm:$0xff] %vm387, 0.0
      %392 = vst.msk [vmem:[#allocation2 + $0x80] sm:$0xff] %vm387, 0.0
      %393 = vst.msk [vmem:[#allocation2 + $0xa0] sm:$0xff] %vm387, 0.0
      %394 = vst.msk [vmem:[#allocation2 + $0xc0] sm:$0xff] %vm387, 0.0
      %395 = vst.msk [vmem:[#allocation2 + $0xe0] sm:$0xff] %vm387, 0.0
      %396 = vst.msk [vmem:[#allocation2 + $0x100] sm:$0xff] %vm387, 0.0
      %397 = vst.msk [vmem:[#allocation2 + $0x120] sm:$0xff] %vm387, 0.0
      %398 = vst.msk [vmem:[#allocation2 + $0x140] sm:$0xff] %vm387, 0.0
      %399 = vst.msk [vmem:[#allocation2 + $0x160] sm:$0xff] %vm387, 0.0
      %400 = vst.msk [vmem:[#allocation2 + $0x180] sm:$0xff] %vm387, 0.0
      %401 = vst.msk [vmem:[#allocation2 + $0x1a0] sm:$0xff] %vm387, 0.0
      %402 = vst.msk [vmem:[#allocation2 + $0x1c0] sm:$0xff] %vm387, 0.0
      %403 = vst.msk [vmem:[#allocation2 + $0x1e0] sm:$0xff] %vm387, 0.0
      %vm404 = vcmask 25600
      %405 = vst.msk [vmem:[#allocation2 + $0x18] sm:$0x3] %vm404, 0.0
      %406 = vst.msk [vmem:[#allocation2 + $0x38] sm:$0x3] %vm404, 0.0
      %407 = vst.msk [vmem:[#allocation2 + $0x58] sm:$0x3] %vm404, 0.0
      %408 = vst.msk [vmem:[#allocation2 + $0x78] sm:$0x3] %vm404, 0.0
      %409 = vst.msk [vmem:[#allocation2 + $0x98] sm:$0x3] %vm404, 0.0
      %410 = vst.msk [vmem:[#allocation2 + $0xb8] sm:$0x3] %vm404, 0.0
      %411 = vst.msk [vmem:[#allocation2 + $0xd8] sm:$0x3] %vm404, 0.0
      %412 = vst.msk [vmem:[#allocation2 + $0xf8] sm:$0x3] %vm404, 0.0
      %413 = vst.msk [vmem:[#allocation2 + $0x118] sm:$0x3] %vm404, 0.0
      %414 = vst.msk [vmem:[#allocation2 + $0x138] sm:$0x3] %vm404, 0.0
      %415 = vst.msk [vmem:[#allocation2 + $0x158] sm:$0x3] %vm404, 0.0
      %416 = vst.msk [vmem:[#allocation2 + $0x178] sm:$0x3] %vm404, 0.0
      %417 = vst.msk [vmem:[#allocation2 + $0x198] sm:$0x3] %vm404, 0.0
      %418 = vst.msk [vmem:[#allocation2 + $0x1b8] sm:$0x3] %vm404, 0.0
      %419 = vst.msk [vmem:[#allocation2 + $0x1d8] sm:$0x3] %vm404, 0.0
      %420 = vst.msk [vmem:[#allocation2 + $0x1f8] sm:$0x3] %vm404, 0.0
      %421 = vst.msk [vmem:[#allocation3] sm:$0xff] %vm387, 0.0
      %422 = vst.msk [vmem:[#allocation3 + $0x8] sm:$0xff] %vm387, 0.0
      %423 = vst.msk [vmem:[#allocation3 + $0x10] sm:$0xff] %vm387, 0.0
      %424 = vst.msk [vmem:[#allocation3 + $0x18] sm:$0xff] %vm387, 0.0
      %s425 = scalar_lea.vmem [#allocation3], 288
      %426 = vst.msk [vmem:[%s425] sm:$0xff] %vm387, 0.0
      %427 = vst.msk [vmem:[%s425 + $0x8] sm:$0xff] %vm387, 0.0
      %428 = vst.msk [vmem:[%s425 + $0x10] sm:$0xff] %vm387, 0.0
      %429 = vst.msk [vmem:[%s425 + $0x18] sm:$0xff] %vm387, 0.0
      %v430 = vld [vmem:[%s381] sm:$0xff]
      %v431 = vld [vmem:[%s381 + $0x8] sm:$0xff]
      %v432 = vld [vmem:[%s381 + $0x10] sm:$0xff]
      %v433 = vld [vmem:[%s381 + $0x18] sm:$0xff]
      %v434 = vld [vmem:[%s381 + $0x20] sm:$0xff]
      %v435 = vld [vmem:[%s381 + $0x28] sm:$0xff]
      %v436 = vld [vmem:[%s381 + $0x30] sm:$0xff]
      %v437 = vld [vmem:[%s381 + $0x38] sm:$0xff]
      %v438 = vld [vmem:[%s381 + $0x40] sm:$0xff]
      %v439 = vld [vmem:[%s381 + $0x48] sm:$0xff]
      %v440 = vld [vmem:[%s381 + $0x50] sm:$0xff]
      %v441 = vld [vmem:[%s381 + $0x58] sm:$0xff]
      %v442 = vld [vmem:[%s381 + $0x60] sm:$0xff]
      %v443 = vld [vmem:[%s381 + $0x68] sm:$0xff]
      %v444 = vld [vmem:[%s381 + $0x70] sm:$0xff]
      %v445 = vld [vmem:[%s381 + $0x78] sm:$0xff]
      %v446 = vld [vmem:[%s381 + $0x80] sm:$0xff]
      %v447 = vld [vmem:[%s381 + $0x88] sm:$0xff]
      %v448 = vld [vmem:[%s381 + $0x90] sm:$0xff]
      %v449 = vld [vmem:[%s381 + $0x98] sm:$0xff]
      %v450 = vld [vmem:[%s381 + $0xa0] sm:$0xff]
      %v451 = vld [vmem:[%s381 + $0xa8] sm:$0xff]
      %v452 = vld [vmem:[%s381 + $0xb0] sm:$0xff]
      %v453 = vld [vmem:[%s381 + $0xb8] sm:$0xff]
      %v454 = vld [vmem:[%s381 + $0xc0] sm:$0xff]
      %v455 = vld [vmem:[%s381 + $0xc8] sm:$0xff]
      %v456 = vld [vmem:[%s381 + $0xd0] sm:$0xff]
      %v457 = vld [vmem:[%s381 + $0xd8] sm:$0xff]
      %v458 = vld [vmem:[%s381 + $0xe0] sm:$0xff]
      %v459 = vld [vmem:[%s381 + $0xe8] sm:$0xff]
      %v460 = vld [vmem:[%s381 + $0xf0] sm:$0xff]
      %v461 = vld [vmem:[%s381 + $0xf8] sm:$0xff]
      %462 = vst.msk [vmem:[#allocation2 + $0x8] sm:$0xff] %vm387, %v430
      %463 = vst.msk [vmem:[#allocation2 + $0x10] sm:$0xff] %vm387, %v431
      %464 = vst.msk [vmem:[#allocation2 + $0x28] sm:$0xff] %vm387, %v432
      %465 = vst.msk [vmem:[#allocation2 + $0x30] sm:$0xff] %vm387, %v433
      %466 = vst.msk [vmem:[#allocation2 + $0x48] sm:$0xff] %vm387, %v434
      %467 = vst.msk [vmem:[#allocation2 + $0x50] sm:$0xff] %vm387, %v435
      %468 = vst.msk [vmem:[#allocation2 + $0x68] sm:$0xff] %vm387, %v436
      %469 = vst.msk [vmem:[#allocation2 + $0x70] sm:$0xff] %vm387, %v437
      %470 = vst.msk [vmem:[#allocation2 + $0x88] sm:$0xff] %vm387, %v438
      %471 = vst.msk [vmem:[#allocation2 + $0x90] sm:$0xff] %vm387, %v439
      %472 = vst.msk [vmem:[#allocation2 + $0xa8] sm:$0xff] %vm387, %v440
      %473 = vst.msk [vmem:[#allocation2 + $0xb0] sm:$0xff] %vm387, %v441
      %474 = vst.msk [vmem:[#allocation2 + $0xc8] sm:$0xff] %vm387, %v442
      %475 = vst.msk [vmem:[#allocation2 + $0xd0] sm:$0xff] %vm387, %v443
      %476 = vst.msk [vmem:[#allocation2 + $0xe8] sm:$0xff] %vm387, %v444
      %477 = vst.msk [vmem:[#allocation2 + $0xf0] sm:$0xff] %vm387, %v445
      %478 = vst.msk [vmem:[#allocation2 + $0x108] sm:$0xff] %vm387, %v446
      %479 = vst.msk [vmem:[#allocation2 + $0x110] sm:$0xff] %vm387, %v447
      %480 = vst.msk [vmem:[#allocation2 + $0x128] sm:$0xff] %vm387, %v448
      %481 = vst.msk [vmem:[#allocation2 + $0x130] sm:$0xff] %vm387, %v449
      %482 = vst.msk [vmem:[#allocation2 + $0x148] sm:$0xff] %vm387, %v450
      %483 = vst.msk [vmem:[#allocation2 + $0x150] sm:$0xff] %vm387, %v451
      %484 = vst.msk [vmem:[#allocation2 + $0x168] sm:$0xff] %vm387, %v452
      %485 = vst.msk [vmem:[#allocation2 + $0x170] sm:$0xff] %vm387, %v453
      %486 = vst.msk [vmem:[#allocation2 + $0x188] sm:$0xff] %vm387, %v454
      %487 = vst.msk [vmem:[#allocation2 + $0x190] sm:$0xff] %vm387, %v455
      %488 = vst.msk [vmem:[#allocation2 + $0x1a8] sm:$0xff] %vm387, %v456
      %489 = vst.msk [vmem:[#allocation2 + $0x1b0] sm:$0xff] %vm387, %v457
      %490 = vst.msk [vmem:[#allocation2 + $0x1c8] sm:$0xff] %vm387, %v458
      %491 = vst.msk [vmem:[#allocation2 + $0x1d0] sm:$0xff] %vm387, %v459
      %492 = vst.msk [vmem:[#allocation2 + $0x1e8] sm:$0xff] %vm387, %v460
      %493 = vst.msk [vmem:[#allocation2 + $0x1f0] sm:$0xff] %vm387, %v461
      %v494 = vld [vmem:[%s1] sm:$0x1]
      %v495 = vld [vmem:[#allocation2 + $0x7] sm:$0xff]
      %v496 = vld [vmem:[#allocation2 + $0xf] sm:$0xff]
      %v497 = vld [vmem:[#allocation2 + $0x27] sm:$0xff]
      %v498 = vld [vmem:[#allocation2 + $0x2f] sm:$0xff]
      %v499 = vld [vmem:[#allocation2 + $0x47] sm:$0xff]
      %v500 = vld [vmem:[#allocation2 + $0x4f] sm:$0xff]
      %v501 = vld [vmem:[#allocation2 + $0x67] sm:$0xff]
      %v502 = vld [vmem:[#allocation2 + $0x6f] sm:$0xff]
      %v503 = vld [vmem:[#allocation2 + $0x87] sm:$0xff]
      %v504 = vld [vmem:[#allocation2 + $0x8f] sm:$0xff]
      %v505 = vld [vmem:[#allocation2 + $0xa7] sm:$0xff]
      %v506 = vld [vmem:[#allocation2 + $0xaf] sm:$0xff]
      %v507 = vld [vmem:[#allocation2 + $0xc7] sm:$0xff]
      %v508 = vld [vmem:[#allocation2 + $0xcf] sm:$0xff]
      %v509 = vld [vmem:[#allocation2 + $0xe7] sm:$0xff]
      %v510 = vld [vmem:[#allocation2 + $0xef] sm:$0xff]
      %v511 = vld [vmem:[#allocation2 + $0x107] sm:$0xff]
      %v512 = vld [vmem:[#allocation2 + $0x10f] sm:$0xff]
      %v513 = vld [vmem:[#allocation2 + $0x127] sm:$0xff]
      %v514 = vld [vmem:[#allocation2 + $0x12f] sm:$0xff]
      %v515 = vld [vmem:[#allocation2 + $0x147] sm:$0xff]
      %v516 = vld [vmem:[#allocation2 + $0x14f] sm:$0xff]
      %v517 = vld [vmem:[#allocation2 + $0x167] sm:$0xff]
      %v518 = vld [vmem:[#allocation2 + $0x16f] sm:$0xff]
      %v519 = vld [vmem:[#allocation2 + $0x187] sm:$0xff]
      %v520 = vld [vmem:[#allocation2 + $0x18f] sm:$0xff]
      %v521 = vld [vmem:[#allocation2 + $0x1a7] sm:$0xff]
      %v522 = vld [vmem:[#allocation2 + $0x1af] sm:$0xff]
      %v523 = vld [vmem:[#allocation2 + $0x1c7] sm:$0xff]
      %v524 = vld [vmem:[#allocation2 + $0x1cf] sm:$0xff]
      %v525 = vld [vmem:[#allocation2 + $0x1e7] sm:$0xff]
      %v526 = vld [vmem:[#allocation2 + $0x1ef] sm:$0xff]
      %v528 = vlaneseq
      %v529 = vshrl.u32 %v528, 7
      %v530 = vsub.s32 0, %v529
      %v531 = vrot.slane %v494, %v530
      %v533 = vmul.f32 %v531, %v495
      %v534 = vmul.f32 %v531, %v496
      %v535 = vmul.f32 %v531, %v497
      %v536 = vmul.f32 %v531, %v498
      %v537 = vmul.f32 %v531, %v499
      %v538 = vmul.f32 %v531, %v500
      %v539 = vmul.f32 %v531, %v501
      %v540 = vmul.f32 %v531, %v502
      %v541 = vmul.f32 %v531, %v503
      %v542 = vmul.f32 %v531, %v504
      %v543 = vmul.f32 %v531, %v505
      %v544 = vmul.f32 %v531, %v506
      %v545 = vmul.f32 %v531, %v507
      %v546 = vmul.f32 %v531, %v508
      %v547 = vmul.f32 %v531, %v509
      %v548 = vmul.f32 %v531, %v510
      %v549 = vmul.f32 %v531, %v511
      %v550 = vmul.f32 %v531, %v512
      %v551 = vmul.f32 %v531, %v513
      %v552 = vmul.f32 %v531, %v514
      %v553 = vmul.f32 %v531, %v515
      %v554 = vmul.f32 %v531, %v516
      %v555 = vmul.f32 %v531, %v517
      %v556 = vmul.f32 %v531, %v518
      %v557 = vmul.f32 %v531, %v519
      %v558 = vmul.f32 %v531, %v520
      %v559 = vmul.f32 %v531, %v521
      %v560 = vmul.f32 %v531, %v522
      %v561 = vmul.f32 %v531, %v523
      %v562 = vmul.f32 %v531, %v524
      %v563 = vmul.f32 %v531, %v525
      %v564 = vmul.f32 %v531, %v526
      %v565 = vld [vmem:[%s2] sm:$0x1]
      %v567 = vlaneseq
      %v568 = vshrl.u32 %v567, 7
      %v569 = vsub.s32 0, %v568
      %v570 = vrot.slane %v565, %v569
      %v572 = vadd.f32 %v533, %v570
      %v573 = vadd.f32 %v534, %v570
      %v574 = vadd.f32 %v535, %v570
      %v575 = vadd.f32 %v536, %v570
      %v576 = vadd.f32 %v537, %v570
      %v577 = vadd.f32 %v538, %v570
      %v578 = vadd.f32 %v539, %v570
      %v579 = vadd.f32 %v540, %v570
      %v580 = vadd.f32 %v541, %v570
      %v581 = vadd.f32 %v542, %v570
      %v582 = vadd.f32 %v543, %v570
      %v583 = vadd.f32 %v544, %v570
      %v584 = vadd.f32 %v545, %v570
      %v585 = vadd.f32 %v546, %v570
      %v586 = vadd.f32 %v547, %v570
      %v587 = vadd.f32 %v548, %v570
      %v588 = vadd.f32 %v549, %v570
      %v589 = vadd.f32 %v550, %v570
      %v590 = vadd.f32 %v551, %v570
      %v591 = vadd.f32 %v552, %v570
      %v592 = vadd.f32 %v553, %v570
      %v593 = vadd.f32 %v554, %v570
      %v594 = vadd.f32 %v555, %v570
      %v595 = vadd.f32 %v556, %v570
      %v596 = vadd.f32 %v557, %v570
      %v597 = vadd.f32 %v558, %v570
      %v598 = vadd.f32 %v559, %v570
      %v599 = vadd.f32 %v560, %v570
      %v600 = vadd.f32 %v561, %v570
      %v601 = vadd.f32 %v562, %v570
      %v602 = vadd.f32 %v563, %v570
      %v603 = vadd.f32 %v564, %v570
      %s604 = scalar_lea.vmem %s1, 1
      %v605 = vld [vmem:[%s604] sm:$0x1]
      %v606 = vld [vmem:[#allocation2 + $0x8] sm:$0xff]
      %v607 = vld [vmem:[#allocation2 + $0x10] sm:$0xff]
      %v608 = vld [vmem:[#allocation2 + $0x28] sm:$0xff]
      %v609 = vld [vmem:[#allocation2 + $0x30] sm:$0xff]
      %v610 = vld [vmem:[#allocation2 + $0x48] sm:$0xff]
      %v611 = vld [vmem:[#allocation2 + $0x50] sm:$0xff]
      %v612 = vld [vmem:[#allocation2 + $0x68] sm:$0xff]
      %v613 = vld [vmem:[#allocation2 + $0x70] sm:$0xff]
      %v614 = vld [vmem:[#allocation2 + $0x88] sm:$0xff]
      %v615 = vld [vmem:[#allocation2 + $0x90] sm:$0xff]
      %v616 = vld [vmem:[#allocation2 + $0xa8] sm:$0xff]
      %v617 = vld [vmem:[#allocation2 + $0xb0] sm:$0xff]
      %v618 = vld [vmem:[#allocation2 + $0xc8] sm:$0xff]
      %v619 = vld [vmem:[#allocation2 + $0xd0] sm:$0xff]
      %v620 = vld [vmem:[#allocation2 + $0xe8] sm:$0xff]
      %v621 = vld [vmem:[#allocation2 + $0xf0] sm:$0xff]
      %v622 = vld [vmem:[#allocation2 + $0x108] sm:$0xff]
      %v623 = vld [vmem:[#allocation2 + $0x110] sm:$0xff]
      %v624 = vld [vmem:[#allocation2 + $0x128] sm:$0xff]
      %v625 = vld [vmem:[#allocation2 + $0x130] sm:$0xff]
      %v626 = vld [vmem:[#allocation2 + $0x148] sm:$0xff]
      %v627 = vld [vmem:[#allocation2 + $0x150] sm:$0xff]
      %v628 = vld [vmem:[#allocation2 + $0x168] sm:$0xff]
      %v629 = vld [vmem:[#allocation2 + $0x170] sm:$0xff]
      %v630 = vld [vmem:[#allocation2 + $0x188] sm:$0xff]
      %v631 = vld [vmem:[#allocation2 + $0x190] sm:$0xff]
      %v632 = vld [vmem:[#allocation2 + $0x1a8] sm:$0xff]
      %v633 = vld [vmem:[#allocation2 + $0x1b0] sm:$0xff]
      %v634 = vld [vmem:[#allocation2 + $0x1c8] sm:$0xff]
      %v635 = vld [vmem:[#allocation2 + $0x1d0] sm:$0xff]
      %v636 = vld [vmem:[#allocation2 + $0x1e8] sm:$0xff]
      %v637 = vld [vmem:[#allocation2 + $0x1f0] sm:$0xff]
      %v639 = vlaneseq
      %v640 = vshrl.u32 %v639, 7
      %v641 = vsub.s32 0, %v640
      %v642 = vrot.slane %v605, %v641
      %v644 = vmul.f32 %v642, %v606
      %v645 = vmul.f32 %v642, %v607
      %v646 = vmul.f32 %v642, %v608
      %v647 = vmul.f32 %v642, %v609
      %v648 = vmul.f32 %v642, %v610
      %v649 = vmul.f32 %v642, %v611
      %v650 = vmul.f32 %v642, %v612
      %v651 = vmul.f32 %v642, %v613
      %v652 = vmul.f32 %v642, %v614
      %v653 = vmul.f32 %v642, %v615
      %v654 = vmul.f32 %v642, %v616
      %v655 = vmul.f32 %v642, %v617
      %v656 = vmul.f32 %v642, %v618
      %v657 = vmul.f32 %v642, %v619
      %v658 = vmul.f32 %v642, %v620
      %v659 = vmul.f32 %v642, %v621
      %v660 = vmul.f32 %v642, %v622
      %v661 = vmul.f32 %v642, %v623
      %v662 = vmul.f32 %v642, %v624
      %v663 = vmul.f32 %v642, %v625
      %v664 = vmul.f32 %v642, %v626
      %v665 = vmul.f32 %v642, %v627
      %v666 = vmul.f32 %v642, %v628
      %v667 = vmul.f32 %v642, %v629
      %v668 = vmul.f32 %v642, %v630
      %v669 = vmul.f32 %v642, %v631
      %v670 = vmul.f32 %v642, %v632
      %v671 = vmul.f32 %v642, %v633
      %v672 = vmul.f32 %v642, %v634
      %v673 = vmul.f32 %v642, %v635
      %v674 = vmul.f32 %v642, %v636
      %v675 = vmul.f32 %v642, %v637
      %v676 = vadd.f32 %v572, %v644
      %v677 = vadd.f32 %v573, %v645
      %v678 = vadd.f32 %v574, %v646
      %v679 = vadd.f32 %v575, %v647
      %v680 = vadd.f32 %v576, %v648
      %v681 = vadd.f32 %v577, %v649
      %v682 = vadd.f32 %v578, %v650
      %v683 = vadd.f32 %v579, %v651
      %v684 = vadd.f32 %v580, %v652
      %v685 = vadd.f32 %v581, %v653
      %v686 = vadd.f32 %v582, %v654
      %v687 = vadd.f32 %v583, %v655
      %v688 = vadd.f32 %v584, %v656
      %v689 = vadd.f32 %v585, %v657
      %v690 = vadd.f32 %v586, %v658
      %v691 = vadd.f32 %v587, %v659
      %v692 = vadd.f32 %v588, %v660
      %v693 = vadd.f32 %v589, %v661
      %v694 = vadd.f32 %v590, %v662
      %v695 = vadd.f32 %v591, %v663
      %v696 = vadd.f32 %v592, %v664
      %v697 = vadd.f32 %v593, %v665
      %v698 = vadd.f32 %v594, %v666
      %v699 = vadd.f32 %v595, %v667
      %v700 = vadd.f32 %v596, %v668
      %v701 = vadd.f32 %v597, %v669
      %v702 = vadd.f32 %v598, %v670
      %v703 = vadd.f32 %v599, %v671
      %v704 = vadd.f32 %v600, %v672
      %v705 = vadd.f32 %v601, %v673
      %v706 = vadd.f32 %v602, %v674
      %v707 = vadd.f32 %v603, %v675
      %s708 = scalar_lea.vmem %s1, 2
      %v709 = vld [vmem:[%s708] sm:$0x1]
      %v710 = vld [vmem:[#allocation2 + $0x9] sm:$0xff]
      %v711 = vld [vmem:[#allocation2 + $0x11] sm:$0xff]
      %v712 = vld [vmem:[#allocation2 + $0x29] sm:$0xff]
      %v713 = vld [vmem:[#allocation2 + $0x31] sm:$0xff]
      %v714 = vld [vmem:[#allocation2 + $0x49] sm:$0xff]
      %v715 = vld [vmem:[#allocation2 + $0x51] sm:$0xff]
      %v716 = vld [vmem:[#allocation2 + $0x69] sm:$0xff]
      %v717 = vld [vmem:[#allocation2 + $0x71] sm:$0xff]
      %v718 = vld [vmem:[#allocation2 + $0x89] sm:$0xff]
      %v719 = vld [vmem:[#allocation2 + $0x91] sm:$0xff]
      %v720 = vld [vmem:[#allocation2 + $0xa9] sm:$0xff]
      %v721 = vld [vmem:[#allocation2 + $0xb1] sm:$0xff]
      %v722 = vld [vmem:[#allocation2 + $0xc9] sm:$0xff]
      %v723 = vld [vmem:[#allocation2 + $0xd1] sm:$0xff]
      %v724 = vld [vmem:[#allocation2 + $0xe9] sm:$0xff]
      %v725 = vld [vmem:[#allocation2 + $0xf1] sm:$0xff]
      %v726 = vld [vmem:[#allocation2 + $0x109] sm:$0xff]
      %v727 = vld [vmem:[#allocation2 + $0x111] sm:$0xff]
      %v728 = vld [vmem:[#allocation2 + $0x129] sm:$0xff]
      %v729 = vld [vmem:[#allocation2 + $0x131] sm:$0xff]
      %v730 = vld [vmem:[#allocation2 + $0x149] sm:$0xff]
      %v731 = vld [vmem:[#allocation2 + $0x151] sm:$0xff]
      %v732 = vld [vmem:[#allocation2 + $0x169] sm:$0xff]
      %v733 = vld [vmem:[#allocation2 + $0x171] sm:$0xff]
      %v734 = vld [vmem:[#allocation2 + $0x189] sm:$0xff]
      %v735 = vld [vmem:[#allocation2 + $0x191] sm:$0xff]
      %v736 = vld [vmem:[#allocation2 + $0x1a9] sm:$0xff]
      %v737 = vld [vmem:[#allocation2 + $0x1b1] sm:$0xff]
      %v738 = vld [vmem:[#allocation2 + $0x1c9] sm:$0xff]
      %v739 = vld [vmem:[#allocation2 + $0x1d1] sm:$0xff]
      %v740 = vld [vmem:[#allocation2 + $0x1e9] sm:$0xff]
      %v741 = vld [vmem:[#allocation2 + $0x1f1] sm:$0xff]
      %v743 = vlaneseq
      %v744 = vshrl.u32 %v743, 7
      %v745 = vsub.s32 0, %v744
      %v746 = vrot.slane %v709, %v745
      %v748 = vmul.f32 %v746, %v710
      %v749 = vmul.f32 %v746, %v711
      %v750 = vmul.f32 %v746, %v712
      %v751 = vmul.f32 %v746, %v713
      %v752 = vmul.f32 %v746, %v714
      %v753 = vmul.f32 %v746, %v715
      %v754 = vmul.f32 %v746, %v716
      %v755 = vmul.f32 %v746, %v717
      %v756 = vmul.f32 %v746, %v718
      %v757 = vmul.f32 %v746, %v719
      %v758 = vmul.f32 %v746, %v720
      %v759 = vmul.f32 %v746, %v721
      %v760 = vmul.f32 %v746, %v722
      %v761 = vmul.f32 %v746, %v723
      %v762 = vmul.f32 %v746, %v724
      %v763 = vmul.f32 %v746, %v725
      %v764 = vmul.f32 %v746, %v726
      %v765 = vmul.f32 %v746, %v727
      %v766 = vmul.f32 %v746, %v728
      %v767 = vmul.f32 %v746, %v729
      %v768 = vmul.f32 %v746, %v730
      %v769 = vmul.f32 %v746, %v731
      %v770 = vmul.f32 %v746, %v732
      %v771 = vmul.f32 %v746, %v733
      %v772 = vmul.f32 %v746, %v734
      %v773 = vmul.f32 %v746, %v735
      %v774 = vmul.f32 %v746, %v736
      %v775 = vmul.f32 %v746, %v737
      %v776 = vmul.f32 %v746, %v738
      %v777 = vmul.f32 %v746, %v739
      %v778 = vmul.f32 %v746, %v740
      %v779 = vmul.f32 %v746, %v741
      %v780 = vadd.f32 %v676, %v748
      %v781 = vadd.f32 %v677, %v749
      %v782 = vadd.f32 %v678, %v750
      %v783 = vadd.f32 %v679, %v751
      %v784 = vadd.f32 %v680, %v752
      %v785 = vadd.f32 %v681, %v753
      %v786 = vadd.f32 %v682, %v754
      %v787 = vadd.f32 %v683, %v755
      %v788 = vadd.f32 %v684, %v756
      %v789 = vadd.f32 %v685, %v757
      %v790 = vadd.f32 %v686, %v758
      %v791 = vadd.f32 %v687, %v759
      %v792 = vadd.f32 %v688, %v760
      %v793 = vadd.f32 %v689, %v761
      %v794 = vadd.f32 %v690, %v762
      %v795 = vadd.f32 %v691, %v763
      %v796 = vadd.f32 %v692, %v764
      %v797 = vadd.f32 %v693, %v765
      %v798 = vadd.f32 %v694, %v766
      %v799 = vadd.f32 %v695, %v767
      %v800 = vadd.f32 %v696, %v768
      %v801 = vadd.f32 %v697, %v769
      %v802 = vadd.f32 %v698, %v770
      %v803 = vadd.f32 %v699, %v771
      %v804 = vadd.f32 %v700, %v772
      %v805 = vadd.f32 %v701, %v773
      %v806 = vadd.f32 %v702, %v774
      %v807 = vadd.f32 %v703, %v775
      %v808 = vadd.f32 %v704, %v776
      %v809 = vadd.f32 %v705, %v777
      %v810 = vadd.f32 %v706, %v778
      %v811 = vadd.f32 %v707, %v779
      %s812 = scalar_lea.vmem [#allocation3], 32
      %813 = vst.msk [vmem:[%s812] sm:$0xff] %vm387, %v780
      %814 = vst.msk [vmem:[%s812 + $0x8] sm:$0xff] %vm387, %v781
      %815 = vst.msk [vmem:[%s812 + $0x10] sm:$0xff] %vm387, %v782
      %816 = vst.msk [vmem:[%s812 + $0x18] sm:$0xff] %vm387, %v783
      %817 = vst.msk [vmem:[%s812 + $0x20] sm:$0xff] %vm387, %v784
      %818 = vst.msk [vmem:[%s812 + $0x28] sm:$0xff] %vm387, %v785
      %819 = vst.msk [vmem:[%s812 + $0x30] sm:$0xff] %vm387, %v786
      %820 = vst.msk [vmem:[%s812 + $0x38] sm:$0xff] %vm387, %v787
      %821 = vst.msk [vmem:[%s812 + $0x40] sm:$0xff] %vm387, %v788
      %822 = vst.msk [vmem:[%s812 + $0x48] sm:$0xff] %vm387, %v789
      %823 = vst.msk [vmem:[%s812 + $0x50] sm:$0xff] %vm387, %v790
      %824 = vst.msk [vmem:[%s812 + $0x58] sm:$0xff] %vm387, %v791
      %825 = vst.msk [vmem:[%s812 + $0x60] sm:$0xff] %vm387, %v792
      %826 = vst.msk [vmem:[%s812 + $0x68] sm:$0xff] %vm387, %v793
      %827 = vst.msk [vmem:[%s812 + $0x70] sm:$0xff] %vm387, %v794
      %828 = vst.msk [vmem:[%s812 + $0x78] sm:$0xff] %vm387, %v795
      %829 = vst.msk [vmem:[%s812 + $0x80] sm:$0xff] %vm387, %v796
      %830 = vst.msk [vmem:[%s812 + $0x88] sm:$0xff] %vm387, %v797
      %831 = vst.msk [vmem:[%s812 + $0x90] sm:$0xff] %vm387, %v798
      %832 = vst.msk [vmem:[%s812 + $0x98] sm:$0xff] %vm387, %v799
      %833 = vst.msk [vmem:[%s812 + $0xa0] sm:$0xff] %vm387, %v800
      %834 = vst.msk [vmem:[%s812 + $0xa8] sm:$0xff] %vm387, %v801
      %835 = vst.msk [vmem:[%s812 + $0xb0] sm:$0xff] %vm387, %v802
      %836 = vst.msk [vmem:[%s812 + $0xb8] sm:$0xff] %vm387, %v803
      %837 = vst.msk [vmem:[%s812 + $0xc0] sm:$0xff] %vm387, %v804
      %838 = vst.msk [vmem:[%s812 + $0xc8] sm:$0xff] %vm387, %v805
      %839 = vst.msk [vmem:[%s812 + $0xd0] sm:$0xff] %vm387, %v806
      %840 = vst.msk [vmem:[%s812 + $0xd8] sm:$0xff] %vm387, %v807
      %841 = vst.msk [vmem:[%s812 + $0xe0] sm:$0xff] %vm387, %v808
      %842 = vst.msk [vmem:[%s812 + $0xe8] sm:$0xff] %vm387, %v809
      %843 = vst.msk [vmem:[%s812 + $0xf0] sm:$0xff] %vm387, %v810
      %844 = vst.msk [vmem:[%s812 + $0xf8] sm:$0xff] %vm387, %v811
      %v845 = vld [vmem:[%s3] sm:$0x1]
      %s846 = scalar_lea.vmem [#allocation3], 16
      %v847 = vld [vmem:[%s846] sm:$0xff]
      %v848 = vld [vmem:[%s846 + $0x8] sm:$0xff]
      %v849 = vld [vmem:[%s846 + $0x10] sm:$0xff]
      %v850 = vld [vmem:[%s846 + $0x18] sm:$0xff]
      %v851 = vld [vmem:[%s846 + $0x20] sm:$0xff]
      %v852 = vld [vmem:[%s846 + $0x28] sm:$0xff]
      %v853 = vld [vmem:[%s846 + $0x30] sm:$0xff]
      %v854 = vld [vmem:[%s846 + $0x38] sm:$0xff]
      %v855 = vld [vmem:[%s846 + $0x40] sm:$0xff]
      %v856 = vld [vmem:[%s846 + $0x48] sm:$0xff]
      %v857 = vld [vmem:[%s846 + $0x50] sm:$0xff]
      %v858 = vld [vmem:[%s846 + $0x58] sm:$0xff]
      %v859 = vld [vmem:[%s846 + $0x60] sm:$0xff]
      %v860 = vld [vmem:[%s846 + $0x68] sm:$0xff]
      %v861 = vld [vmem:[%s846 + $0x70] sm:$0xff]
      %v862 = vld [vmem:[%s846 + $0x78] sm:$0xff]
      %v863 = vld [vmem:[%s846 + $0x80] sm:$0xff]
      %v864 = vld [vmem:[%s846 + $0x88] sm:$0xff]
      %v865 = vld [vmem:[%s846 + $0x90] sm:$0xff]
      %v866 = vld [vmem:[%s846 + $0x98] sm:$0xff]
      %v867 = vld [vmem:[%s846 + $0xa0] sm:$0xff]
      %v868 = vld [vmem:[%s846 + $0xa8] sm:$0xff]
      %v869 = vld [vmem:[%s846 + $0xb0] sm:$0xff]
      %v870 = vld [vmem:[%s846 + $0xb8] sm:$0xff]
      %v871 = vld [vmem:[%s846 + $0xc0] sm:$0xff]
      %v872 = vld [vmem:[%s846 + $0xc8] sm:$0xff]
      %v873 = vld [vmem:[%s846 + $0xd0] sm:$0xff]
      %v874 = vld [vmem:[%s846 + $0xd8] sm:$0xff]
      %v875 = vld [vmem:[%s846 + $0xe0] sm:$0xff]
      %v876 = vld [vmem:[%s846 + $0xe8] sm:$0xff]
      %v877 = vld [vmem:[%s846 + $0xf0] sm:$0xff]
      %v878 = vld [vmem:[%s846 + $0xf8] sm:$0xff]
      %v880 = vlaneseq
      %v881 = vshrl.u32 %v880, 7
      %v882 = vsub.s32 0, %v881
      %v883 = vrot.slane %v845, %v882
      %v885 = vmul.f32 %v883, %v847
      %v886 = vmul.f32 %v883, %v848
      %v887 = vmul.f32 %v883, %v849
      %v888 = vmul.f32 %v883, %v850
      %v889 = vmul.f32 %v883, %v851
      %v890 = vmul.f32 %v883, %v852
      %v891 = vmul.f32 %v883, %v853
      %v892 = vmul.f32 %v883, %v854
      %v893 = vmul.f32 %v883, %v855
      %v894 = vmul.f32 %v883, %v856
      %v895 = vmul.f32 %v883, %v857
      %v896 = vmul.f32 %v883, %v858
      %v897 = vmul.f32 %v883, %v859
      %v898 = vmul.f32 %v883, %v860
      %v899 = vmul.f32 %v883, %v861
      %v900 = vmul.f32 %v883, %v862
      %v901 = vmul.f32 %v883, %v863
      %v902 = vmul.f32 %v883, %v864
      %v903 = vmul.f32 %v883, %v865
      %v904 = vmul.f32 %v883, %v866
      %v905 = vmul.f32 %v883, %v867
      %v906 = vmul.f32 %v883, %v868
      %v907 = vmul.f32 %v883, %v869
      %v908 = vmul.f32 %v883, %v870
      %v909 = vmul.f32 %v883, %v871
      %v910 = vmul.f32 %v883, %v872
      %v911 = vmul.f32 %v883, %v873
      %v912 = vmul.f32 %v883, %v874
      %v913 = vmul.f32 %v883, %v875
      %v914 = vmul.f32 %v883, %v876
      %v915 = vmul.f32 %v883, %v877
      %v916 = vmul.f32 %v883, %v878
      %v917 = vld [vmem:[%s4] sm:$0x1]
      %v919 = vlaneseq
      %v920 = vshrl.u32 %v919, 7
      %v921 = vsub.s32 0, %v920
      %v922 = vrot.slane %v917, %v921
      %v924 = vadd.f32 %v885, %v922
      %v925 = vadd.f32 %v886, %v922
      %v926 = vadd.f32 %v887, %v922
      %v927 = vadd.f32 %v888, %v922
      %v928 = vadd.f32 %v889, %v922
      %v929 = vadd.f32 %v890, %v922
      %v930 = vadd.f32 %v891, %v922
      %v931 = vadd.f32 %v892, %v922
      %v932 = vadd.f32 %v893, %v922
      %v933 = vadd.f32 %v894, %v922
      %v934 = vadd.f32 %v895, %v922
      %v935 = vadd.f32 %v896, %v922
      %v936 = vadd.f32 %v897, %v922
      %v937 = vadd.f32 %v898, %v922
      %v938 = vadd.f32 %v899, %v922
      %v939 = vadd.f32 %v900, %v922
      %v940 = vadd.f32 %v901, %v922
      %v941 = vadd.f32 %v902, %v922
      %v942 = vadd.f32 %v903, %v922
      %v943 = vadd.f32 %v904, %v922
      %v944 = vadd.f32 %v905, %v922
      %v945 = vadd.f32 %v906, %v922
      %v946 = vadd.f32 %v907, %v922
      %v947 = vadd.f32 %v908, %v922
      %v948 = vadd.f32 %v909, %v922
      %v949 = vadd.f32 %v910, %v922
      %v950 = vadd.f32 %v911, %v922
      %v951 = vadd.f32 %v912, %v922
      %v952 = vadd.f32 %v913, %v922
      %v953 = vadd.f32 %v914, %v922
      %v954 = vadd.f32 %v915, %v922
      %v955 = vadd.f32 %v916, %v922
      %s956 = scalar_lea.vmem %s3, 1
      %v957 = vld [vmem:[%s956] sm:$0x1]
      %v958 = vld [vmem:[%s812] sm:$0xff]
      %v959 = vld [vmem:[%s812 + $0x8] sm:$0xff]
      %v960 = vld [vmem:[%s812 + $0x10] sm:$0xff]
      %v961 = vld [vmem:[%s812 + $0x18] sm:$0xff]
      %v962 = vld [vmem:[%s812 + $0x20] sm:$0xff]
      %v963 = vld [vmem:[%s812 + $0x28] sm:$0xff]
      %v964 = vld [vmem:[%s812 + $0x30] sm:$0xff]
      %v965 = vld [vmem:[%s812 + $0x38] sm:$0xff]
      %v966 = vld [vmem:[%s812 + $0x40] sm:$0xff]
      %v967 = vld [vmem:[%s812 + $0x48] sm:$0xff]
      %v968 = vld [vmem:[%s812 + $0x50] sm:$0xff]
      %v969 = vld [vmem:[%s812 + $0x58] sm:$0xff]
      %v970 = vld [vmem:[%s812 + $0x60] sm:$0xff]
      %v971 = vld [vmem:[%s812 + $0x68] sm:$0xff]
      %v972 = vld [vmem:[%s812 + $0x70] sm:$0xff]
      %v973 = vld [vmem:[%s812 + $0x78] sm:$0xff]
      %v974 = vld [vmem:[%s812 + $0x80] sm:$0xff]
      %v975 = vld [vmem:[%s812 + $0x88] sm:$0xff]
      %v976 = vld [vmem:[%s812 + $0x90] sm:$0xff]
      %v977 = vld [vmem:[%s812 + $0x98] sm:$0xff]
      %v978 = vld [vmem:[%s812 + $0xa0] sm:$0xff]
      %v979 = vld [vmem:[%s812 + $0xa8] sm:$0xff]
      %v980 = vld [vmem:[%s812 + $0xb0] sm:$0xff]
      %v981 = vld [vmem:[%s812 + $0xb8] sm:$0xff]
      %v982 = vld [vmem:[%s812 + $0xc0] sm:$0xff]
      %v983 = vld [vmem:[%s812 + $0xc8] sm:$0xff]
      %v984 = vld [vmem:[%s812 + $0xd0] sm:$0xff]
      %v985 = vld [vmem:[%s812 + $0xd8] sm:$0xff]
      %v986 = vld [vmem:[%s812 + $0xe0] sm:$0xff]
      %v987 = vld [vmem:[%s812 + $0xe8] sm:$0xff]
      %v988 = vld [vmem:[%s812 + $0xf0] sm:$0xff]
      %v989 = vld [vmem:[%s812 + $0xf8] sm:$0xff]
      %v991 = vlaneseq
      %v992 = vshrl.u32 %v991, 7
      %v993 = vsub.s32 0, %v992
      %v994 = vrot.slane %v957, %v993
      %v996 = vmul.f32 %v994, %v958
      %v997 = vmul.f32 %v994, %v959
      %v998 = vmul.f32 %v994, %v960
      %v999 = vmul.f32 %v994, %v961
      %v1000 = vmul.f32 %v994, %v962
      %v1001 = vmul.f32 %v994, %v963
      %v1002 = vmul.f32 %v994, %v964
      %v1003 = vmul.f32 %v994, %v965
      %v1004 = vmul.f32 %v994, %v966
      %v1005 = vmul.f32 %v994, %v967
      %v1006 = vmul.f32 %v994, %v968
      %v1007 = vmul.f32 %v994, %v969
      %v1008 = vmul.f32 %v994, %v970
      %v1009 = vmul.f32 %v994, %v971
      %v1010 = vmul.f32 %v994, %v972
      %v1011 = vmul.f32 %v994, %v973
      %v1012 = vmul.f32 %v994, %v974
      %v1013 = vmul.f32 %v994, %v975
      %v1014 = vmul.f32 %v994, %v976
      %v1015 = vmul.f32 %v994, %v977
      %v1016 = vmul.f32 %v994, %v978
      %v1017 = vmul.f32 %v994, %v979
      %v1018 = vmul.f32 %v994, %v980
      %v1019 = vmul.f32 %v994, %v981
      %v1020 = vmul.f32 %v994, %v982
      %v1021 = vmul.f32 %v994, %v983
      %v1022 = vmul.f32 %v994, %v984
      %v1023 = vmul.f32 %v994, %v985
      %v1024 = vmul.f32 %v994, %v986
      %v1025 = vmul.f32 %v994, %v987
      %v1026 = vmul.f32 %v994, %v988
      %v1027 = vmul.f32 %v994, %v989
      %v1028 = vadd.f32 %v924, %v996
      %v1029 = vadd.f32 %v925, %v997
      %v1030 = vadd.f32 %v926, %v998
      %v1031 = vadd.f32 %v927, %v999
      %v1032 = vadd.f32 %v928, %v1000
      %v1033 = vadd.f32 %v929, %v1001
      %v1034 = vadd.f32 %v930, %v1002
      %v1035 = vadd.f32 %v931, %v1003
      %v1036 = vadd.f32 %v932, %v1004
      %v1037 = vadd.f32 %v933, %v1005
      %v1038 = vadd.f32 %v934, %v1006
      %v1039 = vadd.f32 %v935, %v1007
      %v1040 = vadd.f32 %v936, %v1008
      %v1041 = vadd.f32 %v937, %v1009
      %v1042 = vadd.f32 %v938, %v1010
      %v1043 = vadd.f32 %v939, %v1011
      %v1044 = vadd.f32 %v940, %v1012
      %v1045 = vadd.f32 %v941, %v1013
      %v1046 = vadd.f32 %v942, %v1014
      %v1047 = vadd.f32 %v943, %v1015
      %v1048 = vadd.f32 %v944, %v1016
      %v1049 = vadd.f32 %v945, %v1017
      %v1050 = vadd.f32 %v946, %v1018
      %v1051 = vadd.f32 %v947, %v1019
      %v1052 = vadd.f32 %v948, %v1020
      %v1053 = vadd.f32 %v949, %v1021
      %v1054 = vadd.f32 %v950, %v1022
      %v1055 = vadd.f32 %v951, %v1023
      %v1056 = vadd.f32 %v952, %v1024
      %v1057 = vadd.f32 %v953, %v1025
      %v1058 = vadd.f32 %v954, %v1026
      %v1059 = vadd.f32 %v955, %v1027
      %s1060 = scalar_lea.vmem %s3, 2
      %v1061 = vld [vmem:[%s1060] sm:$0x1]
      %s1062 = scalar_lea.vmem [#allocation3], 48
      %v1063 = vld [vmem:[%s1062] sm:$0xff]
      %v1064 = vld [vmem:[%s1062 + $0x8] sm:$0xff]
      %v1065 = vld [vmem:[%s1062 + $0x10] sm:$0xff]
      %v1066 = vld [vmem:[%s1062 + $0x18] sm:$0xff]
      %v1067 = vld [vmem:[%s1062 + $0x20] sm:$0xff]
      %v1068 = vld [vmem:[%s1062 + $0x28] sm:$0xff]
      %v1069 = vld [vmem:[%s1062 + $0x30] sm:$0xff]
      %v1070 = vld [vmem:[%s1062 + $0x38] sm:$0xff]
      %v1071 = vld [vmem:[%s1062 + $0x40] sm:$0xff]
      %v1072 = vld [vmem:[%s1062 + $0x48] sm:$0xff]
      %v1073 = vld [vmem:[%s1062 + $0x50] sm:$0xff]
      %v1074 = vld [vmem:[%s1062 + $0x58] sm:$0xff]
      %v1075 = vld [vmem:[%s1062 + $0x60] sm:$0xff]
      %v1076 = vld [vmem:[%s1062 + $0x68] sm:$0xff]
      %v1077 = vld [vmem:[%s1062 + $0x70] sm:$0xff]
      %v1078 = vld [vmem:[%s1062 + $0x78] sm:$0xff]
      %v1079 = vld [vmem:[%s1062 + $0x80] sm:$0xff]
      %v1080 = vld [vmem:[%s1062 + $0x88] sm:$0xff]
      %v1081 = vld [vmem:[%s1062 + $0x90] sm:$0xff]
      %v1082 = vld [vmem:[%s1062 + $0x98] sm:$0xff]
      %v1083 = vld [vmem:[%s1062 + $0xa0] sm:$0xff]
      %v1084 = vld [vmem:[%s1062 + $0xa8] sm:$0xff]
      %v1085 = vld [vmem:[%s1062 + $0xb0] sm:$0xff]
      %v1086 = vld [vmem:[%s1062 + $0xb8] sm:$0xff]
      %v1087 = vld [vmem:[%s1062 + $0xc0] sm:$0xff]
      %v1088 = vld [vmem:[%s1062 + $0xc8] sm:$0xff]
      %v1089 = vld [vmem:[%s1062 + $0xd0] sm:$0xff]
      %v1090 = vld [vmem:[%s1062 + $0xd8] sm:$0xff]
      %v1091 = vld [vmem:[%s1062 + $0xe0] sm:$0xff]
      %v1092 = vld [vmem:[%s1062 + $0xe8] sm:$0xff]
      %v1093 = vld [vmem:[%s1062 + $0xf0] sm:$0xff]
      %v1094 = vld [vmem:[%s1062 + $0xf8] sm:$0xff]
      %v1096 = vlaneseq
      %v1097 = vshrl.u32 %v1096, 7
      %v1098 = vsub.s32 0, %v1097
      %v1099 = vrot.slane %v1061, %v1098
      %v1101 = vmul.f32 %v1099, %v1063
      %v1102 = vmul.f32 %v1099, %v1064
      %v1103 = vmul.f32 %v1099, %v1065
      %v1104 = vmul.f32 %v1099, %v1066
      %v1105 = vmul.f32 %v1099, %v1067
      %v1106 = vmul.f32 %v1099, %v1068
      %v1107 = vmul.f32 %v1099, %v1069
      %v1108 = vmul.f32 %v1099, %v1070
      %v1109 = vmul.f32 %v1099, %v1071
      %v1110 = vmul.f32 %v1099, %v1072
      %v1111 = vmul.f32 %v1099, %v1073
      %v1112 = vmul.f32 %v1099, %v1074
      %v1113 = vmul.f32 %v1099, %v1075
      %v1114 = vmul.f32 %v1099, %v1076
      %v1115 = vmul.f32 %v1099, %v1077
      %v1116 = vmul.f32 %v1099, %v1078
      %v1117 = vmul.f32 %v1099, %v1079
      %v1118 = vmul.f32 %v1099, %v1080
      %v1119 = vmul.f32 %v1099, %v1081
      %v1120 = vmul.f32 %v1099, %v1082
      %v1121 = vmul.f32 %v1099, %v1083
      %v1122 = vmul.f32 %v1099, %v1084
      %v1123 = vmul.f32 %v1099, %v1085
      %v1124 = vmul.f32 %v1099, %v1086
      %v1125 = vmul.f32 %v1099, %v1087
      %v1126 = vmul.f32 %v1099, %v1088
      %v1127 = vmul.f32 %v1099, %v1089
      %v1128 = vmul.f32 %v1099, %v1090
      %v1129 = vmul.f32 %v1099, %v1091
      %v1130 = vmul.f32 %v1099, %v1092
      %v1131 = vmul.f32 %v1099, %v1093
      %v1132 = vmul.f32 %v1099, %v1094
      %v1133 = vadd.f32 %v1028, %v1101
      %v1134 = vadd.f32 %v1029, %v1102
      %v1135 = vadd.f32 %v1030, %v1103
      %v1136 = vadd.f32 %v1031, %v1104
      %v1137 = vadd.f32 %v1032, %v1105
      %v1138 = vadd.f32 %v1033, %v1106
      %v1139 = vadd.f32 %v1034, %v1107
      %v1140 = vadd.f32 %v1035, %v1108
      %v1141 = vadd.f32 %v1036, %v1109
      %v1142 = vadd.f32 %v1037, %v1110
      %v1143 = vadd.f32 %v1038, %v1111
      %v1144 = vadd.f32 %v1039, %v1112
      %v1145 = vadd.f32 %v1040, %v1113
      %v1146 = vadd.f32 %v1041, %v1114
      %v1147 = vadd.f32 %v1042, %v1115
      %v1148 = vadd.f32 %v1043, %v1116
      %v1149 = vadd.f32 %v1044, %v1117
      %v1150 = vadd.f32 %v1045, %v1118
      %v1151 = vadd.f32 %v1046, %v1119
      %v1152 = vadd.f32 %v1047, %v1120
      %v1153 = vadd.f32 %v1048, %v1121
      %v1154 = vadd.f32 %v1049, %v1122
      %v1155 = vadd.f32 %v1050, %v1123
      %v1156 = vadd.f32 %v1051, %v1124
      %v1157 = vadd.f32 %v1052, %v1125
      %v1158 = vadd.f32 %v1053, %v1126
      %v1159 = vadd.f32 %v1054, %v1127
      %v1160 = vadd.f32 %v1055, %v1128
      %v1161 = vadd.f32 %v1056, %v1129
      %v1162 = vadd.f32 %v1057, %v1130
      %v1163 = vadd.f32 %v1058, %v1131
      %v1164 = vadd.f32 %v1059, %v1132
      %1165 = vst.msk [vmem:[#allocation2 + $0x8] sm:$0xff] %vm387, %v1133
      %1166 = vst.msk [vmem:[#allocation2 + $0x10] sm:$0xff] %vm387, %v1134
      %1167 = vst.msk [vmem:[#allocation2 + $0x28] sm:$0xff] %vm387, %v1135
      %1168 = vst.msk [vmem:[#allocation2 + $0x30] sm:$0xff] %vm387, %v1136
      %1169 = vst.msk [vmem:[#allocation2 + $0x48] sm:$0xff] %vm387, %v1137
      %1170 = vst.msk [vmem:[#allocation2 + $0x50] sm:$0xff] %vm387, %v1138
      %1171 = vst.msk [vmem:[#allocation2 + $0x68] sm:$0xff] %vm387, %v1139
      %1172 = vst.msk [vmem:[#allocation2 + $0x70] sm:$0xff] %vm387, %v1140
      %1173 = vst.msk [vmem:[#allocation2 + $0x88] sm:$0xff] %vm387, %v1141
      %1174 = vst.msk [vmem:[#allocation2 + $0x90] sm:$0xff] %vm387, %v1142
      %1175 = vst.msk [vmem:[#allocation2 + $0xa8] sm:$0xff] %vm387, %v1143
      %1176 = vst.msk [vmem:[#allocation2 + $0xb0] sm:$0xff] %vm387, %v1144
      %1177 = vst.msk [vmem:[#allocation2 + $0xc8] sm:$0xff] %vm387, %v1145
      %1178 = vst.msk [vmem:[#allocation2 + $0xd0] sm:$0xff] %vm387, %v1146
      %1179 = vst.msk [vmem:[#allocation2 + $0xe8] sm:$0xff] %vm387, %v1147
      %1180 = vst.msk [vmem:[#allocation2 + $0xf0] sm:$0xff] %vm387, %v1148
      %1181 = vst.msk [vmem:[#allocation2 + $0x108] sm:$0xff] %vm387, %v1149
      %1182 = vst.msk [vmem:[#allocation2 + $0x110] sm:$0xff] %vm387, %v1150
      %1183 = vst.msk [vmem:[#allocation2 + $0x128] sm:$0xff] %vm387, %v1151
      %1184 = vst.msk [vmem:[#allocation2 + $0x130] sm:$0xff] %vm387, %v1152
      %1185 = vst.msk [vmem:[#allocation2 + $0x148] sm:$0xff] %vm387, %v1153
      %1186 = vst.msk [vmem:[#allocation2 + $0x150] sm:$0xff] %vm387, %v1154
      %1187 = vst.msk [vmem:[#allocation2 + $0x168] sm:$0xff] %vm387, %v1155
      %1188 = vst.msk [vmem:[#allocation2 + $0x170] sm:$0xff] %vm387, %v1156
      %1189 = vst.msk [vmem:[#allocation2 + $0x188] sm:$0xff] %vm387, %v1157
      %1190 = vst.msk [vmem:[#allocation2 + $0x190] sm:$0xff] %vm387, %v1158
      %1191 = vst.msk [vmem:[#allocation2 + $0x1a8] sm:$0xff] %vm387, %v1159
      %1192 = vst.msk [vmem:[#allocation2 + $0x1b0] sm:$0xff] %vm387, %v1160
      %1193 = vst.msk [vmem:[#allocation2 + $0x1c8] sm:$0xff] %vm387, %v1161
      %1194 = vst.msk [vmem:[#allocation2 + $0x1d0] sm:$0xff] %vm387, %v1162
      %1195 = vst.msk [vmem:[#allocation2 + $0x1e8] sm:$0xff] %vm387, %v1163
      %1196 = vst.msk [vmem:[#allocation2 + $0x1f0] sm:$0xff] %vm387, %v1164
      %v1197 = vld [vmem:[%s5] sm:$0x1]
      %v1198 = vld [vmem:[#allocation2 + $0x6] sm:$0xff]
      %v1199 = vld [vmem:[#allocation2 + $0xe] sm:$0xff]
      %v1200 = vld [vmem:[#allocation2 + $0x26] sm:$0xff]
      %v1201 = vld [vmem:[#allocation2 + $0x2e] sm:$0xff]
      %v1202 = vld [vmem:[#allocation2 + $0x46] sm:$0xff]
      %v1203 = vld [vmem:[#allocation2 + $0x4e] sm:$0xff]
      %v1204 = vld [vmem:[#allocation2 + $0x66] sm:$0xff]
      %v1205 = vld [vmem:[#allocation2 + $0x6e] sm:$0xff]
      %v1206 = vld [vmem:[#allocation2 + $0x86] sm:$0xff]
      %v1207 = vld [vmem:[#allocation2 + $0x8e] sm:$0xff]
      %v1208 = vld [vmem:[#allocation2 + $0xa6] sm:$0xff]
      %v1209 = vld [vmem:[#allocation2 + $0xae] sm:$0xff]
      %v1210 = vld [vmem:[#allocation2 + $0xc6] sm:$0xff]
      %v1211 = vld [vmem:[#allocation2 + $0xce] sm:$0xff]
      %v1212 = vld [vmem:[#allocation2 + $0xe6] sm:$0xff]
      %v1213 = vld [vmem:[#allocation2 + $0xee] sm:$0xff]
      %v1214 = vld [vmem:[#allocation2 + $0x106] sm:$0xff]
      %v1215 = vld [vmem:[#allocation2 + $0x10e] sm:$0xff]
      %v1216 = vld [vmem:[#allocation2 + $0x126] sm:$0xff]
      %v1217 = vld [vmem:[#allocation2 + $0x12e] sm:$0xff]
      %v1218 = vld [vmem:[#allocation2 + $0x146] sm:$0xff]
      %v1219 = vld [vmem:[#allocation2 + $0x14e] sm:$0xff]
      %v1220 = vld [vmem:[#allocation2 + $0x166] sm:$0xff]
      %v1221 = vld [vmem:[#allocation2 + $0x16e] sm:$0xff]
      %v1222 = vld [vmem:[#allocation2 + $0x186] sm:$0xff]
      %v1223 = vld [vmem:[#allocation2 + $0x18e] sm:$0xff]
      %v1224 = vld [vmem:[#allocation2 + $0x1a6] sm:$0xff]
      %v1225 = vld [vmem:[#allocation2 + $0x1ae] sm:$0xff]
      %v1226 = vld [vmem:[#allocation2 + $0x1c6] sm:$0xff]
      %v1227 = vld [vmem:[#allocation2 + $0x1ce] sm:$0xff]
      %v1228 = vld [vmem:[#allocation2 + $0x1e6] sm:$0xff]
      %v1229 = vld [vmem:[#allocation2 + $0x1ee] sm:$0xff]
      %v1231 = vlaneseq
      %v1232 = vshrl.u32 %v1231, 7
      %v1233 = vsub.s32 0, %v1232
      %v1234 = vrot.slane %v1197, %v1233
      %v1236 = vmul.f32 %v1234, %v1198
      %v1237 = vmul.f32 %v1234, %v1199
      %v1238 = vmul.f32 %v1234, %v1200
      %v1239 = vmul.f32 %v1234, %v1201
      %v1240 = vmul.f32 %v1234, %v1202
      %v1241 = vmul.f32 %v1234, %v1203
      %v1242 = vmul.f32 %v1234, %v1204
      %v1243 = vmul.f32 %v1234, %v1205
      %v1244 = vmul.f32 %v1234, %v1206
      %v1245 = vmul.f32 %v1234, %v1207
      %v1246 = vmul.f32 %v1234, %v1208
      %v1247 = vmul.f32 %v1234, %v1209
      %v1248 = vmul.f32 %v1234, %v1210
      %v1249 = vmul.f32 %v1234, %v1211
      %v1250 = vmul.f32 %v1234, %v1212
      %v1251 = vmul.f32 %v1234, %v1213
      %v1252 = vmul.f32 %v1234, %v1214
      %v1253 = vmul.f32 %v1234, %v1215
      %v1254 = vmul.f32 %v1234, %v1216
      %v1255 = vmul.f32 %v1234, %v1217
      %v1256 = vmul.f32 %v1234, %v1218
      %v1257 = vmul.f32 %v1234, %v1219
      %v1258 = vmul.f32 %v1234, %v1220
      %v1259 = vmul.f32 %v1234, %v1221
      %v1260 = vmul.f32 %v1234, %v1222
      %v1261 = vmul.f32 %v1234, %v1223
      %v1262 = vmul.f32 %v1234, %v1224
      %v1263 = vmul.f32 %v1234, %v1225
      %v1264 = vmul.f32 %v1234, %v1226
      %v1265 = vmul.f32 %v1234, %v1227
      %v1266 = vmul.f32 %v1234, %v1228
      %v1267 = vmul.f32 %v1234, %v1229
      %v1268 = vld [vmem:[%s6] sm:$0x1]
      %v1270 = vlaneseq
      %v1271 = vshrl.u32 %v1270, 7
      %v1272 = vsub.s32 0, %v1271
      %v1273 = vrot.slane %v1268, %v1272
      %v1275 = vadd.f32 %v1236, %v1273
      %v1276 = vadd.f32 %v1237, %v1273
      %v1277 = vadd.f32 %v1238, %v1273
      %v1278 = vadd.f32 %v1239, %v1273
      %v1279 = vadd.f32 %v1240, %v1273
      %v1280 = vadd.f32 %v1241, %v1273
      %v1281 = vadd.f32 %v1242, %v1273
      %v1282 = vadd.f32 %v1243, %v1273
      %v1283 = vadd.f32 %v1244, %v1273
      %v1284 = vadd.f32 %v1245, %v1273
      %v1285 = vadd.f32 %v1246, %v1273
      %v1286 = vadd.f32 %v1247, %v1273
      %v1287 = vadd.f32 %v1248, %v1273
      %v1288 = vadd.f32 %v1249, %v1273
      %v1289 = vadd.f32 %v1250, %v1273
      %v1290 = vadd.f32 %v1251, %v1273
      %v1291 = vadd.f32 %v1252, %v1273
      %v1292 = vadd.f32 %v1253, %v1273
      %v1293 = vadd.f32 %v1254, %v1273
      %v1294 = vadd.f32 %v1255, %v1273
      %v1295 = vadd.f32 %v1256, %v1273
      %v1296 = vadd.f32 %v1257, %v1273
      %v1297 = vadd.f32 %v1258, %v1273
      %v1298 = vadd.f32 %v1259, %v1273
      %v1299 = vadd.f32 %v1260, %v1273
      %v1300 = vadd.f32 %v1261, %v1273
      %v1301 = vadd.f32 %v1262, %v1273
      %v1302 = vadd.f32 %v1263, %v1273
      %v1303 = vadd.f32 %v1264, %v1273
      %v1304 = vadd.f32 %v1265, %v1273
      %v1305 = vadd.f32 %v1266, %v1273
      %v1306 = vadd.f32 %v1267, %v1273
      %s1307 = scalar_lea.vmem %s5, 1
      %v1308 = vld [vmem:[%s1307] sm:$0x1]
      %v1309 = vld [vmem:[#allocation2 + $0x8] sm:$0xff]
      %v1310 = vld [vmem:[#allocation2 + $0x10] sm:$0xff]
      %v1311 = vld [vmem:[#allocation2 + $0x28] sm:$0xff]
      %v1312 = vld [vmem:[#allocation2 + $0x30] sm:$0xff]
      %v1313 = vld [vmem:[#allocation2 + $0x48] sm:$0xff]
      %v1314 = vld [vmem:[#allocation2 + $0x50] sm:$0xff]
      %v1315 = vld [vmem:[#allocation2 + $0x68] sm:$0xff]
      %v1316 = vld [vmem:[#allocation2 + $0x70] sm:$0xff]
      %v1317 = vld [vmem:[#allocation2 + $0x88] sm:$0xff]
      %v1318 = vld [vmem:[#allocation2 + $0x90] sm:$0xff]
      %v1319 = vld [vmem:[#allocation2 + $0xa8] sm:$0xff]
      %v1320 = vld [vmem:[#allocation2 + $0xb0] sm:$0xff]
      %v1321 = vld [vmem:[#allocation2 + $0xc8] sm:$0xff]
      %v1322 = vld [vmem:[#allocation2 + $0xd0] sm:$0xff]
      %v1323 = vld [vmem:[#allocation2 + $0xe8] sm:$0xff]
      %v1324 = vld [vmem:[#allocation2 + $0xf0] sm:$0xff]
      %v1325 = vld [vmem:[#allocation2 + $0x108] sm:$0xff]
      %v1326 = vld [vmem:[#allocation2 + $0x110] sm:$0xff]
      %v1327 = vld [vmem:[#allocation2 + $0x128] sm:$0xff]
      %v1328 = vld [vmem:[#allocation2 + $0x130] sm:$0xff]
      %v1329 = vld [vmem:[#allocation2 + $0x148] sm:$0xff]
      %v1330 = vld [vmem:[#allocation2 + $0x150] sm:$0xff]
      %v1331 = vld [vmem:[#allocation2 + $0x168] sm:$0xff]
      %v1332 = vld [vmem:[#allocation2 + $0x170] sm:$0xff]
      %v1333 = vld [vmem:[#allocation2 + $0x188] sm:$0xff]
      %v1334 = vld [vmem:[#allocation2 + $0x190] sm:$0xff]
      %v1335 = vld [vmem:[#allocation2 + $0x1a8] sm:$0xff]
      %v1336 = vld [vmem:[#allocation2 + $0x1b0] sm:$0xff]
      %v1337 = vld [vmem:[#allocation2 + $0x1c8] sm:$0xff]
      %v1338 = vld [vmem:[#allocation2 + $0x1d0] sm:$0xff]
      %v1339 = vld [vmem:[#allocation2 + $0x1e8] sm:$0xff]
      %v1340 = vld [vmem:[#allocation2 + $0x1f0] sm:$0xff]
      %v1342 = vlaneseq
      %v1343 = vshrl.u32 %v1342, 7
      %v1344 = vsub.s32 0, %v1343
      %v1345 = vrot.slane %v1308, %v1344
      %v1347 = vmul.f32 %v1345, %v1309
      %v1348 = vmul.f32 %v1345, %v1310
      %v1349 = vmul.f32 %v1345, %v1311
      %v1350 = vmul.f32 %v1345, %v1312
      %v1351 = vmul.f32 %v1345, %v1313
      %v1352 = vmul.f32 %v1345, %v1314
      %v1353 = vmul.f32 %v1345, %v1315
      %v1354 = vmul.f32 %v1345, %v1316
      %v1355 = vmul.f32 %v1345, %v1317
      %v1356 = vmul.f32 %v1345, %v1318
      %v1357 = vmul.f32 %v1345, %v1319
      %v1358 = vmul.f32 %v1345, %v1320
      %v1359 = vmul.f32 %v1345, %v1321
      %v1360 = vmul.f32 %v1345, %v1322
      %v1361 = vmul.f32 %v1345, %v1323
      %v1362 = vmul.f32 %v1345, %v1324
      %v1363 = vmul.f32 %v1345, %v1325
      %v1364 = vmul.f32 %v1345, %v1326
      %v1365 = vmul.f32 %v1345, %v1327
      %v1366 = vmul.f32 %v1345, %v1328
      %v1367 = vmul.f32 %v1345, %v1329
      %v1368 = vmul.f32 %v1345, %v1330
      %v1369 = vmul.f32 %v1345, %v1331
      %v1370 = vmul.f32 %v1345, %v1332
      %v1371 = vmul.f32 %v1345, %v1333
      %v1372 = vmul.f32 %v1345, %v1334
      %v1373 = vmul.f32 %v1345, %v1335
      %v1374 = vmul.f32 %v1345, %v1336
      %v1375 = vmul.f32 %v1345, %v1337
      %v1376 = vmul.f32 %v1345, %v1338
      %v1377 = vmul.f32 %v1345, %v1339
      %v1378 = vmul.f32 %v1345, %v1340
      %v1379 = vadd.f32 %v1275, %v1347
      %v1380 = vadd.f32 %v1276, %v1348
      %v1381 = vadd.f32 %v1277, %v1349
      %v1382 = vadd.f32 %v1278, %v1350
      %v1383 = vadd.f32 %v1279, %v1351
      %v1384 = vadd.f32 %v1280, %v1352
      %v1385 = vadd.f32 %v1281, %v1353
      %v1386 = vadd.f32 %v1282, %v1354
      %v1387 = vadd.f32 %v1283, %v1355
      %v1388 = vadd.f32 %v1284, %v1356
      %v1389 = vadd.f32 %v1285, %v1357
      %v1390 = vadd.f32 %v1286, %v1358
      %v1391 = vadd.f32 %v1287, %v1359
      %v1392 = vadd.f32 %v1288, %v1360
      %v1393 = vadd.f32 %v1289, %v1361
      %v1394 = vadd.f32 %v1290, %v1362
      %v1395 = vadd.f32 %v1291, %v1363
      %v1396 = vadd.f32 %v1292, %v1364
      %v1397 = vadd.f32 %v1293, %v1365
      %v1398 = vadd.f32 %v1294, %v1366
      %v1399 = vadd.f32 %v1295, %v1367
      %v1400 = vadd.f32 %v1296, %v1368
      %v1401 = vadd.f32 %v1297, %v1369
      %v1402 = vadd.f32 %v1298, %v1370
      %v1403 = vadd.f32 %v1299, %v1371
      %v1404 = vadd.f32 %v1300, %v1372
      %v1405 = vadd.f32 %v1301, %v1373
      %v1406 = vadd.f32 %v1302, %v1374
      %v1407 = vadd.f32 %v1303, %v1375
      %v1408 = vadd.f32 %v1304, %v1376
      %v1409 = vadd.f32 %v1305, %v1377
      %v1410 = vadd.f32 %v1306, %v1378
      %s1411 = scalar_lea.vmem %s5, 2
      %v1412 = vld [vmem:[%s1411] sm:$0x1]
      %v1413 = vld [vmem:[#allocation2 + $0xa] sm:$0xff]
      %v1414 = vld [vmem:[#allocation2 + $0x12] sm:$0xff]
      %v1415 = vld [vmem:[#allocation2 + $0x2a] sm:$0xff]
      %v1416 = vld [vmem:[#allocation2 + $0x32] sm:$0xff]
      %v1417 = vld [vmem:[#allocation2 + $0x4a] sm:$0xff]
      %v1418 = vld [vmem:[#allocation2 + $0x52] sm:$0xff]
      %v1419 = vld [vmem:[#allocation2 + $0x6a] sm:$0xff]
      %v1420 = vld [vmem:[#allocation2 + $0x72] sm:$0xff]
      %v1421 = vld [vmem:[#allocation2 + $0x8a] sm:$0xff]
      %v1422 = vld [vmem:[#allocation2 + $0x92] sm:$0xff]
      %v1423 = vld [vmem:[#allocation2 + $0xaa] sm:$0xff]
      %v1424 = vld [vmem:[#allocation2 + $0xb2] sm:$0xff]
      %v1425 = vld [vmem:[#allocation2 + $0xca] sm:$0xff]
      %v1426 = vld [vmem:[#allocation2 + $0xd2] sm:$0xff]
      %v1427 = vld [vmem:[#allocation2 + $0xea] sm:$0xff]
      %v1428 = vld [vmem:[#allocation2 + $0xf2] sm:$0xff]
      %v1429 = vld [vmem:[#allocation2 + $0x10a] sm:$0xff]
      %v1430 = vld [vmem:[#allocation2 + $0x112] sm:$0xff]
      %v1431 = vld [vmem:[#allocation2 + $0x12a] sm:$0xff]
      %v1432 = vld [vmem:[#allocation2 + $0x132] sm:$0xff]
      %v1433 = vld [vmem:[#allocation2 + $0x14a] sm:$0xff]
      %v1434 = vld [vmem:[#allocation2 + $0x152] sm:$0xff]
      %v1435 = vld [vmem:[#allocation2 + $0x16a] sm:$0xff]
      %v1436 = vld [vmem:[#allocation2 + $0x172] sm:$0xff]
      %v1437 = vld [vmem:[#allocation2 + $0x18a] sm:$0xff]
      %v1438 = vld [vmem:[#allocation2 + $0x192] sm:$0xff]
      %v1439 = vld [vmem:[#allocation2 + $0x1aa] sm:$0xff]
      %v1440 = vld [vmem:[#allocation2 + $0x1b2] sm:$0xff]
      %v1441 = vld [vmem:[#allocation2 + $0x1ca] sm:$0xff]
      %v1442 = vld [vmem:[#allocation2 + $0x1d2] sm:$0xff]
      %v1443 = vld [vmem:[#allocation2 + $0x1ea] sm:$0xff]
      %v1444 = vld [vmem:[#allocation2 + $0x1f2] sm:$0xff]
      %v1446 = vlaneseq
      %v1447 = vshrl.u32 %v1446, 7
      %v1448 = vsub.s32 0, %v1447
      %v1449 = vrot.slane %v1412, %v1448
      %v1451 = vmul.f32 %v1449, %v1413
      %v1452 = vmul.f32 %v1449, %v1414
      %v1453 = vmul.f32 %v1449, %v1415
      %v1454 = vmul.f32 %v1449, %v1416
      %v1455 = vmul.f32 %v1449, %v1417
      %v1456 = vmul.f32 %v1449, %v1418
      %v1457 = vmul.f32 %v1449, %v1419
      %v1458 = vmul.f32 %v1449, %v1420
      %v1459 = vmul.f32 %v1449, %v1421
      %v1460 = vmul.f32 %v1449, %v1422
      %v1461 = vmul.f32 %v1449, %v1423
      %v1462 = vmul.f32 %v1449, %v1424
      %v1463 = vmul.f32 %v1449, %v1425
      %v1464 = vmul.f32 %v1449, %v1426
      %v1465 = vmul.f32 %v1449, %v1427
      %v1466 = vmul.f32 %v1449, %v1428
      %v1467 = vmul.f32 %v1449, %v1429
      %v1468 = vmul.f32 %v1449, %v1430
      %v1469 = vmul.f32 %v1449, %v1431
      %v1470 = vmul.f32 %v1449, %v1432
      %v1471 = vmul.f32 %v1449, %v1433
      %v1472 = vmul.f32 %v1449, %v1434
      %v1473 = vmul.f32 %v1449, %v1435
      %v1474 = vmul.f32 %v1449, %v1436
      %v1475 = vmul.f32 %v1449, %v1437
      %v1476 = vmul.f32 %v1449, %v1438
      %v1477 = vmul.f32 %v1449, %v1439
      %v1478 = vmul.f32 %v1449, %v1440
      %v1479 = vmul.f32 %v1449, %v1441
      %v1480 = vmul.f32 %v1449, %v1442
      %v1481 = vmul.f32 %v1449, %v1443
      %v1482 = vmul.f32 %v1449, %v1444
      %v1483 = vadd.f32 %v1379, %v1451
      %v1484 = vadd.f32 %v1380, %v1452
      %v1485 = vadd.f32 %v1381, %v1453
      %v1486 = vadd.f32 %v1382, %v1454
      %v1487 = vadd.f32 %v1383, %v1455
      %v1488 = vadd.f32 %v1384, %v1456
      %v1489 = vadd.f32 %v1385, %v1457
      %v1490 = vadd.f32 %v1386, %v1458
      %v1491 = vadd.f32 %v1387, %v1459
      %v1492 = vadd.f32 %v1388, %v1460
      %v1493 = vadd.f32 %v1389, %v1461
      %v1494 = vadd.f32 %v1390, %v1462
      %v1495 = vadd.f32 %v1391, %v1463
      %v1496 = vadd.f32 %v1392, %v1464
      %v1497 = vadd.f32 %v1393, %v1465
      %v1498 = vadd.f32 %v1394, %v1466
      %v1499 = vadd.f32 %v1395, %v1467
      %v1500 = vadd.f32 %v1396, %v1468
      %v1501 = vadd.f32 %v1397, %v1469
      %v1502 = vadd.f32 %v1398, %v1470
      %v1503 = vadd.f32 %v1399, %v1471
      %v1504 = vadd.f32 %v1400, %v1472
      %v1505 = vadd.f32 %v1401, %v1473
      %v1506 = vadd.f32 %v1402, %v1474
      %v1507 = vadd.f32 %v1403, %v1475
      %v1508 = vadd.f32 %v1404, %v1476
      %v1509 = vadd.f32 %v1405, %v1477
      %v1510 = vadd.f32 %v1406, %v1478
      %v1511 = vadd.f32 %v1407, %v1479
      %v1512 = vadd.f32 %v1408, %v1480
      %v1513 = vadd.f32 %v1409, %v1481
      %v1514 = vadd.f32 %v1410, %v1482
      %1515 = vst.msk [vmem:[%s812] sm:$0xff] %vm387, %v1483
      %1516 = vst.msk [vmem:[%s812 + $0x8] sm:$0xff] %vm387, %v1484
      %1517 = vst.msk [vmem:[%s812 + $0x10] sm:$0xff] %vm387, %v1485
      %1518 = vst.msk [vmem:[%s812 + $0x18] sm:$0xff] %vm387, %v1486
      %1519 = vst.msk [vmem:[%s812 + $0x20] sm:$0xff] %vm387, %v1487
      %1520 = vst.msk [vmem:[%s812 + $0x28] sm:$0xff] %vm387, %v1488
      %1521 = vst.msk [vmem:[%s812 + $0x30] sm:$0xff] %vm387, %v1489
      %1522 = vst.msk [vmem:[%s812 + $0x38] sm:$0xff] %vm387, %v1490
      %1523 = vst.msk [vmem:[%s812 + $0x40] sm:$0xff] %vm387, %v1491
      %1524 = vst.msk [vmem:[%s812 + $0x48] sm:$0xff] %vm387, %v1492
      %1525 = vst.msk [vmem:[%s812 + $0x50] sm:$0xff] %vm387, %v1493
      %1526 = vst.msk [vmem:[%s812 + $0x58] sm:$0xff] %vm387, %v1494
      %1527 = vst.msk [vmem:[%s812 + $0x60] sm:$0xff] %vm387, %v1495
      %1528 = vst.msk [vmem:[%s812 + $0x68] sm:$0xff] %vm387, %v1496
      %1529 = vst.msk [vmem:[%s812 + $0x70] sm:$0xff] %vm387, %v1497
      %1530 = vst.msk [vmem:[%s812 + $0x78] sm:$0xff] %vm387, %v1498
      %1531 = vst.msk [vmem:[%s812 + $0x80] sm:$0xff] %vm387, %v1499
      %1532 = vst.msk [vmem:[%s812 + $0x88] sm:$0xff] %vm387, %v1500
      %1533 = vst.msk [vmem:[%s812 + $0x90] sm:$0xff] %vm387, %v1501
      %1534 = vst.msk [vmem:[%s812 + $0x98] sm:$0xff] %vm387, %v1502
      %1535 = vst.msk [vmem:[%s812 + $0xa0] sm:$0xff] %vm387, %v1503
      %1536 = vst.msk [vmem:[%s812 + $0xa8] sm:$0xff] %vm387, %v1504
      %1537 = vst.msk [vmem:[%s812 + $0xb0] sm:$0xff] %vm387, %v1505
      %1538 = vst.msk [vmem:[%s812 + $0xb8] sm:$0xff] %vm387, %v1506
      %1539 = vst.msk [vmem:[%s812 + $0xc0] sm:$0xff] %vm387, %v1507
      %1540 = vst.msk [vmem:[%s812 + $0xc8] sm:$0xff] %vm387, %v1508
      %1541 = vst.msk [vmem:[%s812 + $0xd0] sm:$0xff] %vm387, %v1509
      %1542 = vst.msk [vmem:[%s812 + $0xd8] sm:$0xff] %vm387, %v1510
      %1543 = vst.msk [vmem:[%s812 + $0xe0] sm:$0xff] %vm387, %v1511
      %1544 = vst.msk [vmem:[%s812 + $0xe8] sm:$0xff] %vm387, %v1512
      %1545 = vst.msk [vmem:[%s812 + $0xf0] sm:$0xff] %vm387, %v1513
      %1546 = vst.msk [vmem:[%s812 + $0xf8] sm:$0xff] %vm387, %v1514
      %v1547 = vld [vmem:[%s7] sm:$0x1]
      %v1548 = vld [vmem:[#allocation3] sm:$0xff]
      %v1549 = vld [vmem:[#allocation3 + $0x8] sm:$0xff]
      %v1550 = vld [vmem:[#allocation3 + $0x10] sm:$0xff]
      %v1551 = vld [vmem:[#allocation3 + $0x18] sm:$0xff]
      %v1552 = vld [vmem:[#allocation3 + $0x20] sm:$0xff]
      %v1553 = vld [vmem:[#allocation3 + $0x28] sm:$0xff]
      %v1554 = vld [vmem:[#allocation3 + $0x30] sm:$0xff]
      %v1555 = vld [vmem:[#allocation3 + $0x38] sm:$0xff]
      %v1556 = vld [vmem:[#allocation3 + $0x40] sm:$0xff]
      %v1557 = vld [vmem:[#allocation3 + $0x48] sm:$0xff]
      %v1558 = vld [vmem:[#allocation3 + $0x50] sm:$0xff]
      %v1559 = vld [vmem:[#allocation3 + $0x58] sm:$0xff]
      %v1560 = vld [vmem:[#allocation3 + $0x60] sm:$0xff]
      %v1561 = vld [vmem:[#allocation3 + $0x68] sm:$0xff]
      %v1562 = vld [vmem:[#allocation3 + $0x70] sm:$0xff]
      %v1563 = vld [vmem:[#allocation3 + $0x78] sm:$0xff]
      %v1564 = vld [vmem:[#allocation3 + $0x80] sm:$0xff]
      %v1565 = vld [vmem:[#allocation3 + $0x88] sm:$0xff]
      %v1566 = vld [vmem:[#allocation3 + $0x90] sm:$0xff]
      %v1567 = vld [vmem:[#allocation3 + $0x98] sm:$0xff]
      %v1568 = vld [vmem:[#allocation3 + $0xa0] sm:$0xff]
      %v1569 = vld [vmem:[#allocation3 + $0xa8] sm:$0xff]
      %v1570 = vld [vmem:[#allocation3 + $0xb0] sm:$0xff]
      %v1571 = vld [vmem:[#allocation3 + $0xb8] sm:$0xff]
      %v1572 = vld [vmem:[#allocation3 + $0xc0] sm:$0xff]
      %v1573 = vld [vmem:[#allocation3 + $0xc8] sm:$0xff]
      %v1574 = vld [vmem:[#allocation3 + $0xd0] sm:$0xff]
      %v1575 = vld [vmem:[#allocation3 + $0xd8] sm:$0xff]
      %v1576 = vld [vmem:[#allocation3 + $0xe0] sm:$0xff]
      %v1577 = vld [vmem:[#allocation3 + $0xe8] sm:$0xff]
      %v1578 = vld [vmem:[#allocation3 + $0xf0] sm:$0xff]
      %v1579 = vld [vmem:[#allocation3 + $0xf8] sm:$0xff]
      %v1581 = vlaneseq
      %v1582 = vshrl.u32 %v1581, 7
      %v1583 = vsub.s32 0, %v1582
      %v1584 = vrot.slane %v1547, %v1583
      %v1586 = vmul.f32 %v1584, %v1548
      %v1587 = vmul.f32 %v1584, %v1549
      %v1588 = vmul.f32 %v1584, %v1550
      %v1589 = vmul.f32 %v1584, %v1551
      %v1590 = vmul.f32 %v1584, %v1552
      %v1591 = vmul.f32 %v1584, %v1553
      %v1592 = vmul.f32 %v1584, %v1554
      %v1593 = vmul.f32 %v1584, %v1555
      %v1594 = vmul.f32 %v1584, %v1556
      %v1595 = vmul.f32 %v1584, %v1557
      %v1596 = vmul.f32 %v1584, %v1558
      %v1597 = vmul.f32 %v1584, %v1559
      %v1598 = vmul.f32 %v1584, %v1560
      %v1599 = vmul.f32 %v1584, %v1561
      %v1600 = vmul.f32 %v1584, %v1562
      %v1601 = vmul.f32 %v1584, %v1563
      %v1602 = vmul.f32 %v1584, %v1564
      %v1603 = vmul.f32 %v1584, %v1565
      %v1604 = vmul.f32 %v1584, %v1566
      %v1605 = vmul.f32 %v1584, %v1567
      %v1606 = vmul.f32 %v1584, %v1568
      %v1607 = vmul.f32 %v1584, %v1569
      %v1608 = vmul.f32 %v1584, %v1570
      %v1609 = vmul.f32 %v1584, %v1571
      %v1610 = vmul.f32 %v1584, %v1572
      %v1611 = vmul.f32 %v1584, %v1573
      %v1612 = vmul.f32 %v1584, %v1574
      %v1613 = vmul.f32 %v1584, %v1575
      %v1614 = vmul.f32 %v1584, %v1576
      %v1615 = vmul.f32 %v1584, %v1577
      %v1616 = vmul.f32 %v1584, %v1578
      %v1617 = vmul.f32 %v1584, %v1579
      %v1618 = vld [vmem:[%s8] sm:$0x1]
      %v1620 = vlaneseq
      %v1621 = vshrl.u32 %v1620, 7
      %v1622 = vsub.s32 0, %v1621
      %v1623 = vrot.slane %v1618, %v1622
      %v1625 = vadd.f32 %v1586, %v1623
      %v1626 = vadd.f32 %v1587, %v1623
      %v1627 = vadd.f32 %v1588, %v1623
      %v1628 = vadd.f32 %v1589, %v1623
      %v1629 = vadd.f32 %v1590, %v1623
      %v1630 = vadd.f32 %v1591, %v1623
      %v1631 = vadd.f32 %v1592, %v1623
      %v1632 = vadd.f32 %v1593, %v1623
      %v1633 = vadd.f32 %v1594, %v1623
      %v1634 = vadd.f32 %v1595, %v1623
      %v1635 = vadd.f32 %v1596, %v1623
      %v1636 = vadd.f32 %v1597, %v1623
      %v1637 = vadd.f32 %v1598, %v1623
      %v1638 = vadd.f32 %v1599, %v1623
      %v1639 = vadd.f32 %v1600, %v1623
      %v1640 = vadd.f32 %v1601, %v1623
      %v1641 = vadd.f32 %v1602, %v1623
      %v1642 = vadd.f32 %v1603, %v1623
      %v1643 = vadd.f32 %v1604, %v1623
      %v1644 = vadd.f32 %v1605, %v1623
      %v1645 = vadd.f32 %v1606, %v1623
      %v1646 = vadd.f32 %v1607, %v1623
      %v1647 = vadd.f32 %v1608, %v1623
      %v1648 = vadd.f32 %v1609, %v1623
      %v1649 = vadd.f32 %v1610, %v1623
      %v1650 = vadd.f32 %v1611, %v1623
      %v1651 = vadd.f32 %v1612, %v1623
      %v1652 = vadd.f32 %v1613, %v1623
      %v1653 = vadd.f32 %v1614, %v1623
      %v1654 = vadd.f32 %v1615, %v1623
      %v1655 = vadd.f32 %v1616, %v1623
      %v1656 = vadd.f32 %v1617, %v1623
      %s1657 = scalar_lea.vmem %s7, 1
      %v1658 = vld [vmem:[%s1657] sm:$0x1]
      %v1659 = vld [vmem:[%s812] sm:$0xff]
      %v1660 = vld [vmem:[%s812 + $0x8] sm:$0xff]
      %v1661 = vld [vmem:[%s812 + $0x10] sm:$0xff]
      %v1662 = vld [vmem:[%s812 + $0x18] sm:$0xff]
      %v1663 = vld [vmem:[%s812 + $0x20] sm:$0xff]
      %v1664 = vld [vmem:[%s812 + $0x28] sm:$0xff]
      %v1665 = vld [vmem:[%s812 + $0x30] sm:$0xff]
      %v1666 = vld [vmem:[%s812 + $0x38] sm:$0xff]
      %v1667 = vld [vmem:[%s812 + $0x40] sm:$0xff]
      %v1668 = vld [vmem:[%s812 + $0x48] sm:$0xff]
      %v1669 = vld [vmem:[%s812 + $0x50] sm:$0xff]
      %v1670 = vld [vmem:[%s812 + $0x58] sm:$0xff]
      %v1671 = vld [vmem:[%s812 + $0x60] sm:$0xff]
      %v1672 = vld [vmem:[%s812 + $0x68] sm:$0xff]
      %v1673 = vld [vmem:[%s812 + $0x70] sm:$0xff]
      %v1674 = vld [vmem:[%s812 + $0x78] sm:$0xff]
      %v1675 = vld [vmem:[%s812 + $0x80] sm:$0xff]
      %v1676 = vld [vmem:[%s812 + $0x88] sm:$0xff]
      %v1677 = vld [vmem:[%s812 + $0x90] sm:$0xff]
      %v1678 = vld [vmem:[%s812 + $0x98] sm:$0xff]
      %v1679 = vld [vmem:[%s812 + $0xa0] sm:$0xff]
      %v1680 = vld [vmem:[%s812 + $0xa8] sm:$0xff]
      %v1681 = vld [vmem:[%s812 + $0xb0] sm:$0xff]
      %v1682 = vld [vmem:[%s812 + $0xb8] sm:$0xff]
      %v1683 = vld [vmem:[%s812 + $0xc0] sm:$0xff]
      %v1684 = vld [vmem:[%s812 + $0xc8] sm:$0xff]
      %v1685 = vld [vmem:[%s812 + $0xd0] sm:$0xff]
      %v1686 = vld [vmem:[%s812 + $0xd8] sm:$0xff]
      %v1687 = vld [vmem:[%s812 + $0xe0] sm:$0xff]
      %v1688 = vld [vmem:[%s812 + $0xe8] sm:$0xff]
      %v1689 = vld [vmem:[%s812 + $0xf0] sm:$0xff]
      %v1690 = vld [vmem:[%s812 + $0xf8] sm:$0xff]
      %v1692 = vlaneseq
      %v1693 = vshrl.u32 %v1692, 7
      %v1694 = vsub.s32 0, %v1693
      %v1695 = vrot.slane %v1658, %v1694
      %v1697 = vmul.f32 %v1695, %v1659
      %v1698 = vmul.f32 %v1695, %v1660
      %v1699 = vmul.f32 %v1695, %v1661
      %v1700 = vmul.f32 %v1695, %v1662
      %v1701 = vmul.f32 %v1695, %v1663
      %v1702 = vmul.f32 %v1695, %v1664
      %v1703 = vmul.f32 %v1695, %v1665
      %v1704 = vmul.f32 %v1695, %v1666
      %v1705 = vmul.f32 %v1695, %v1667
      %v1706 = vmul.f32 %v1695, %v1668
      %v1707 = vmul.f32 %v1695, %v1669
      %v1708 = vmul.f32 %v1695, %v1670
      %v1709 = vmul.f32 %v1695, %v1671
      %v1710 = vmul.f32 %v1695, %v1672
      %v1711 = vmul.f32 %v1695, %v1673
      %v1712 = vmul.f32 %v1695, %v1674
      %v1713 = vmul.f32 %v1695, %v1675
      %v1714 = vmul.f32 %v1695, %v1676
      %v1715 = vmul.f32 %v1695, %v1677
      %v1716 = vmul.f32 %v1695, %v1678
      %v1717 = vmul.f32 %v1695, %v1679
      %v1718 = vmul.f32 %v1695, %v1680
      %v1719 = vmul.f32 %v1695, %v1681
      %v1720 = vmul.f32 %v1695, %v1682
      %v1721 = vmul.f32 %v1695, %v1683
      %v1722 = vmul.f32 %v1695, %v1684
      %v1723 = vmul.f32 %v1695, %v1685
      %v1724 = vmul.f32 %v1695, %v1686
      %v1725 = vmul.f32 %v1695, %v1687
      %v1726 = vmul.f32 %v1695, %v1688
      %v1727 = vmul.f32 %v1695, %v1689
      %v1728 = vmul.f32 %v1695, %v1690
      %v1729 = vadd.f32 %v1625, %v1697
      %v1730 = vadd.f32 %v1626, %v1698
      %v1731 = vadd.f32 %v1627, %v1699
      %v1732 = vadd.f32 %v1628, %v1700
      %v1733 = vadd.f32 %v1629, %v1701
      %v1734 = vadd.f32 %v1630, %v1702
      %v1735 = vadd.f32 %v1631, %v1703
      %v1736 = vadd.f32 %v1632, %v1704
      %v1737 = vadd.f32 %v1633, %v1705
      %v1738 = vadd.f32 %v1634, %v1706
      %v1739 = vadd.f32 %v1635, %v1707
      %v1740 = vadd.f32 %v1636, %v1708
      %v1741 = vadd.f32 %v1637, %v1709
      %v1742 = vadd.f32 %v1638, %v1710
      %v1743 = vadd.f32 %v1639, %v1711
      %v1744 = vadd.f32 %v1640, %v1712
      %v1745 = vadd.f32 %v1641, %v1713
      %v1746 = vadd.f32 %v1642, %v1714
      %v1747 = vadd.f32 %v1643, %v1715
      %v1748 = vadd.f32 %v1644, %v1716
      %v1749 = vadd.f32 %v1645, %v1717
      %v1750 = vadd.f32 %v1646, %v1718
      %v1751 = vadd.f32 %v1647, %v1719
      %v1752 = vadd.f32 %v1648, %v1720
      %v1753 = vadd.f32 %v1649, %v1721
      %v1754 = vadd.f32 %v1650, %v1722
      %v1755 = vadd.f32 %v1651, %v1723
      %v1756 = vadd.f32 %v1652, %v1724
      %v1757 = vadd.f32 %v1653, %v1725
      %v1758 = vadd.f32 %v1654, %v1726
      %v1759 = vadd.f32 %v1655, %v1727
      %v1760 = vadd.f32 %v1656, %v1728
      %s1761 = scalar_lea.vmem %s7, 2
      %v1762 = vld [vmem:[%s1761] sm:$0x1]
      %s1763 = scalar_lea.vmem [#allocation3], 64
      %v1764 = vld [vmem:[%s1763] sm:$0xff]
      %v1765 = vld [vmem:[%s1763 + $0x8] sm:$0xff]
      %v1766 = vld [vmem:[%s1763 + $0x10] sm:$0xff]
      %v1767 = vld [vmem:[%s1763 + $0x18] sm:$0xff]
      %v1768 = vld [vmem:[%s1763 + $0x20] sm:$0xff]
      %v1769 = vld [vmem:[%s1763 + $0x28] sm:$0xff]
      %v1770 = vld [vmem:[%s1763 + $0x30] sm:$0xff]
      %v1771 = vld [vmem:[%s1763 + $0x38] sm:$0xff]
      %v1772 = vld [vmem:[%s1763 + $0x40] sm:$0xff]
      %v1773 = vld [vmem:[%s1763 + $0x48] sm:$0xff]
      %v1774 = vld [vmem:[%s1763 + $0x50] sm:$0xff]
      %v1775 = vld [vmem:[%s1763 + $0x58] sm:$0xff]
      %v1776 = vld [vmem:[%s1763 + $0x60] sm:$0xff]
      %v1777 = vld [vmem:[%s1763 + $0x68] sm:$0xff]
      %v1778 = vld [vmem:[%s1763 + $0x70] sm:$0xff]
      %v1779 = vld [vmem:[%s1763 + $0x78] sm:$0xff]
      %v1780 = vld [vmem:[%s1763 + $0x80] sm:$0xff]
      %v1781 = vld [vmem:[%s1763 + $0x88] sm:$0xff]
      %v1782 = vld [vmem:[%s1763 + $0x90] sm:$0xff]
      %v1783 = vld [vmem:[%s1763 + $0x98] sm:$0xff]
      %v1784 = vld [vmem:[%s1763 + $0xa0] sm:$0xff]
      %v1785 = vld [vmem:[%s1763 + $0xa8] sm:$0xff]
      %v1786 = vld [vmem:[%s1763 + $0xb0] sm:$0xff]
      %v1787 = vld [vmem:[%s1763 + $0xb8] sm:$0xff]
      %v1788 = vld [vmem:[%s1763 + $0xc0] sm:$0xff]
      %v1789 = vld [vmem:[%s1763 + $0xc8] sm:$0xff]
      %v1790 = vld [vmem:[%s1763 + $0xd0] sm:$0xff]
      %v1791 = vld [vmem:[%s1763 + $0xd8] sm:$0xff]
      %v1792 = vld [vmem:[%s1763 + $0xe0] sm:$0xff]
      %v1793 = vld [vmem:[%s1763 + $0xe8] sm:$0xff]
      %v1794 = vld [vmem:[%s1763 + $0xf0] sm:$0xff]
      %v1795 = vld [vmem:[%s1763 + $0xf8] sm:$0xff]
      %v1797 = vlaneseq
      %v1798 = vshrl.u32 %v1797, 7
      %v1799 = vsub.s32 0, %v1798
      %v1800 = vrot.slane %v1762, %v1799
      %v1802 = vmul.f32 %v1800, %v1764
      %v1803 = vmul.f32 %v1800, %v1765
      %v1804 = vmul.f32 %v1800, %v1766
      %v1805 = vmul.f32 %v1800, %v1767
      %v1806 = vmul.f32 %v1800, %v1768
      %v1807 = vmul.f32 %v1800, %v1769
      %v1808 = vmul.f32 %v1800, %v1770
      %v1809 = vmul.f32 %v1800, %v1771
      %v1810 = vmul.f32 %v1800, %v1772
      %v1811 = vmul.f32 %v1800, %v1773
      %v1812 = vmul.f32 %v1800, %v1774
      %v1813 = vmul.f32 %v1800, %v1775
      %v1814 = vmul.f32 %v1800, %v1776
      %v1815 = vmul.f32 %v1800, %v1777
      %v1816 = vmul.f32 %v1800, %v1778
      %v1817 = vmul.f32 %v1800, %v1779
      %v1818 = vmul.f32 %v1800, %v1780
      %v1819 = vmul.f32 %v1800, %v1781
      %v1820 = vmul.f32 %v1800, %v1782
      %v1821 = vmul.f32 %v1800, %v1783
      %v1822 = vmul.f32 %v1800, %v1784
      %v1823 = vmul.f32 %v1800, %v1785
      %v1824 = vmul.f32 %v1800, %v1786
      %v1825 = vmul.f32 %v1800, %v1787
      %v1826 = vmul.f32 %v1800, %v1788
      %v1827 = vmul.f32 %v1800, %v1789
      %v1828 = vmul.f32 %v1800, %v1790
      %v1829 = vmul.f32 %v1800, %v1791
      %v1830 = vmul.f32 %v1800, %v1792
      %v1831 = vmul.f32 %v1800, %v1793
      %v1832 = vmul.f32 %v1800, %v1794
      %v1833 = vmul.f32 %v1800, %v1795
      %v1834 = vadd.f32 %v1729, %v1802
      %v1835 = vadd.f32 %v1730, %v1803
      %v1836 = vadd.f32 %v1731, %v1804
      %v1837 = vadd.f32 %v1732, %v1805
      %v1838 = vadd.f32 %v1733, %v1806
      %v1839 = vadd.f32 %v1734, %v1807
      %v1840 = vadd.f32 %v1735, %v1808
      %v1841 = vadd.f32 %v1736, %v1809
      %v1842 = vadd.f32 %v1737, %v1810
      %v1843 = vadd.f32 %v1738, %v1811
      %v1844 = vadd.f32 %v1739, %v1812
      %v1845 = vadd.f32 %v1740, %v1813
      %v1846 = vadd.f32 %v1741, %v1814
      %v1847 = vadd.f32 %v1742, %v1815
      %v1848 = vadd.f32 %v1743, %v1816
      %v1849 = vadd.f32 %v1744, %v1817
      %v1850 = vadd.f32 %v1745, %v1818
      %v1851 = vadd.f32 %v1746, %v1819
      %v1852 = vadd.f32 %v1747, %v1820
      %v1853 = vadd.f32 %v1748, %v1821
      %v1854 = vadd.f32 %v1749, %v1822
      %v1855 = vadd.f32 %v1750, %v1823
      %v1856 = vadd.f32 %v1751, %v1824
      %v1857 = vadd.f32 %v1752, %v1825
      %v1858 = vadd.f32 %v1753, %v1826
      %v1859 = vadd.f32 %v1754, %v1827
      %v1860 = vadd.f32 %v1755, %v1828
      %v1861 = vadd.f32 %v1756, %v1829
      %v1862 = vadd.f32 %v1757, %v1830
      %v1863 = vadd.f32 %v1758, %v1831
      %v1864 = vadd.f32 %v1759, %v1832
      %v1865 = vadd.f32 %v1760, %v1833
      %v1866 = vld [vmem:[%s9] sm:$0xf]
      %v1868 = vsel %vm387, %v1834, 0
      %v1871 = vsel %vm387, %v1835, 0
      %v1874 = vsel %vm387, %v1836, 0
      %v1877 = vsel %vm387, %v1837, 0
      %v1880 = vsel %vm387, %v1838, 0
      %v1883 = vsel %vm387, %v1839, 0
      %v1886 = vsel %vm387, %v1840, 0
      %v1889 = vsel %vm387, %v1841, 0
      %v1892 = vsel %vm387, %v1842, 0
      %v1895 = vsel %vm387, %v1843, 0
      %v1898 = vsel %vm387, %v1844, 0
      %v1901 = vsel %vm387, %v1845, 0
      %v1904 = vsel %vm387, %v1846, 0
      %v1907 = vsel %vm387, %v1847, 0
      %v1910 = vsel %vm387, %v1848, 0
      %v1913 = vsel %vm387, %v1849, 0
      %v1916 = vsel %vm387, %v1850, 0
      %v1919 = vsel %vm387, %v1851, 0
      %v1922 = vsel %vm387, %v1852, 0
      %v1925 = vsel %vm387, %v1853, 0
      %v1928 = vsel %vm387, %v1854, 0
      %v1931 = vsel %vm387, %v1855, 0
      %v1934 = vsel %vm387, %v1856, 0
      %v1937 = vsel %vm387, %v1857, 0
      %v1940 = vsel %vm387, %v1858, 0
      %v1943 = vsel %vm387, %v1859, 0
      %v1946 = vsel %vm387, %v1860, 0
      %v1949 = vsel %vm387, %v1861, 0
      %v1952 = vsel %vm387, %v1862, 0
      %v1955 = vsel %vm387, %v1863, 0
      %v1958 = vsel %vm387, %v1864, 0
      %v1961 = vsel %vm387, %v1865, 0
      %vm1963 = vcmask 1043456
      %v1965 = vsel %vm1963, %v1866, 0
      %1967 = vmatprep.subr.mxu0 0.0
      %1968 = vmatpush1.msra.mxu0 %v1965
      %1969 = vmatprep.subr.mxu0 0.0
      %1970 = vmatpush1.msra.mxu0 0.0
      %1971 = vmatprep.subr.mxu0 0.0
      %1972 = vmatpush1.msra.mxu0 0.0
      %1973 = vmatprep.subr.mxu0 0.0
      %1974 = vmatpush1.msra.mxu0 0.0
      %1975 = vmatprep.subr.mxu0 0.0
      %1976 = vmatpush1.msra.mxu0 0.0
      %1977 = vmatprep.subr.mxu0 0.0
      %1978 = vmatpush1.msra.mxu0 0.0
      %1979 = vmatprep.subr.mxu0 0.0
      %1980 = vmatpush1.msra.mxu0 0.0
      %1981 = vmatprep.subr.mxu0 0.0
      %1982 = vmatpush1.msra.mxu0 0.0
      %1983 = vmatprep.subr.mxu0 0.0
      %1984 = vmatpush1.msra.mxu0 0.0
      %1985 = vmatprep.subr.mxu0 0.0
      %1986 = vmatpush1.msra.mxu0 0.0
      %1987 = vmatprep.subr.mxu0 0.0
      %1988 = vmatpush1.msra.mxu0 0.0
      %1989 = vmatprep.subr.mxu0 0.0
      %1990 = vmatpush1.msra.mxu0 0.0
      %1991 = vmatprep.subr.mxu0 0.0
      %1992 = vmatpush1.msra.mxu0 0.0
      %1993 = vmatprep.subr.mxu0 0.0
      %1994 = vmatpush1.msra.mxu0 0.0
      %1995 = vmatprep.subr.mxu0 0.0
      %1996 = vmatpush1.msra.mxu0 0.0
      %1997 = vmatprep.subr.mxu0 0.0
      %1998 = vmatpush1.msra.mxu0 0.0
      %1999 = vmatprep.subr.mxu0 0.0
      %2000 = vmatpush1.msra.mxu0 0.0
      %2001 = vmatprep.subr.mxu0 0.0
      %2002 = vmatpush1.msra.mxu0 0.0
      %2003 = vmatprep.subr.mxu0 0.0
      %2004 = vmatpush1.msra.mxu0 0.0
      %2005 = vmatprep.subr.mxu0 0.0
      %2006 = vmatpush1.msra.mxu0 0.0
      %2007 = vmatprep.subr.mxu0 0.0
      %2008 = vmatpush1.msra.mxu0 0.0
      %2009 = vmatprep.subr.mxu0 0.0
      %2010 = vmatpush1.msra.mxu0 0.0
      %2011 = vmatprep.subr.mxu0 0.0
      %2012 = vmatpush1.msra.mxu0 0.0
      %2013 = vmatprep.subr.mxu0 0.0
      %2014 = vmatpush1.msra.mxu0 0.0
      %2015 = vmatprep.subr.mxu0 0.0
      %2016 = vmatpush1.msra.mxu0 0.0
      %2017 = vmatprep.subr.mxu0 0.0
      %2018 = vmatpush1.msra.mxu0 0.0
      %2019 = vmatprep.subr.mxu0 0.0
      %2020 = vmatpush1.msra.mxu0 0.0
      %2021 = vmatprep.subr.mxu0 0.0
      %2022 = vmatpush1.msra.mxu0 0.0
      %2023 = vmatprep.subr.mxu0 0.0
      %2024 = vmatpush1.msra.mxu0 0.0
      %2025 = vmatprep.subr.mxu0 0.0
      %2026 = vmatpush1.msra.mxu0 0.0
      %2027 = vmatprep.subr.mxu0 0.0
      %2028 = vmatpush1.msra.mxu0 0.0
      %2029 = vmatprep.subr.mxu0 0.0
      %2030 = vmatpush1.msra.mxu0 0.0
      %2031 = vmatprep.mubr.f32.mxu0 0.0
      %2032 = vmatmul.mubr.f32.gmra.mrb[0].mxu0 %v1868
      %v2033 = vpop.f32.mrb[0].mxu0
      %v2034 = vadd.f32 0.0, %v2033
      %v2035 = vpop.f32.mrb[0].mxu0
      %2036 = vmatprep.mubr.f32.mxu0 0.0
      %2037 = vmatmul.mubr.f32.gmra.mrb[0].mxu0 %v1871
      %v2038 = vpop.f32.mrb[0].mxu0
      %v2039 = vadd.f32 0.0, %v2038
      %v2040 = vpop.f32.mrb[0].mxu0
      %2041 = vmatprep.mubr.f32.mxu0 0.0
      %2042 = vmatmul.mubr.f32.gmra.mrb[0].mxu0 %v1874
      %v2043 = vpop.f32.mrb[0].mxu0
      %v2044 = vadd.f32 0.0, %v2043
      %v2045 = vpop.f32.mrb[0].mxu0
      %2046 = vmatprep.mubr.f32.mxu0 0.0
      %2047 = vmatmul.mubr.f32.gmra.mrb[0].mxu0 %v1877
      %v2048 = vpop.f32.mrb[0].mxu0
      %v2049 = vadd.f32 0.0, %v2048
      %v2050 = vpop.f32.mrb[0].mxu0
      %2051 = vmatprep.mubr.f32.mxu0 0.0
      %2052 = vmatmul.mubr.f32.gmra.mrb[0].mxu0 %v1880
      %v2053 = vpop.f32.mrb[0].mxu0
      %v2054 = vadd.f32 0.0, %v2053
      %v2055 = vpop.f32.mrb[0].mxu0
      %2056 = vmatprep.mubr.f32.mxu0 0.0
      %2057 = vmatmul.mubr.f32.gmra.mrb[0].mxu0 %v1883
      %v2058 = vpop.f32.mrb[0].mxu0
      %v2059 = vadd.f32 0.0, %v2058
      %v2060 = vpop.f32.mrb[0].mxu0
      %2061 = vmatprep.mubr.f32.mxu0 0.0
      %2062 = vmatmul.mubr.f32.gmra.mrb[0].mxu0 %v1886
      %v2063 = vpop.f32.mrb[0].mxu0
      %v2064 = vadd.f32 0.0, %v2063
      %v2065 = vpop.f32.mrb[0].mxu0
      %2066 = vmatprep.mubr.f32.mxu0 0.0
      %2067 = vmatmul.mubr.f32.gmra.mrb[0].mxu0 %v1889
      %v2068 = vpop.f32.mrb[0].mxu0
      %v2069 = vadd.f32 0.0, %v2068
      %v2070 = vpop.f32.mrb[0].mxu0
      %2071 = vmatprep.mubr.f32.mxu0 0.0
      %2072 = vmatmul.mubr.f32.gmra.mrb[0].mxu0 %v1892
      %v2073 = vpop.f32.mrb[0].mxu0
      %v2074 = vadd.f32 0.0, %v2073
      %v2075 = vpop.f32.mrb[0].mxu0
      %2076 = vmatprep.mubr.f32.mxu0 0.0
      %2077 = vmatmul.mubr.f32.gmra.mrb[0].mxu0 %v1895
      %v2078 = vpop.f32.mrb[0].mxu0
      %v2079 = vadd.f32 0.0, %v2078
      %v2080 = vpop.f32.mrb[0].mxu0
      %2081 = vmatprep.mubr.f32.mxu0 0.0
      %2082 = vmatmul.mubr.f32.gmra.mrb[0].mxu0 %v1898
      %v2083 = vpop.f32.mrb[0].mxu0
      %v2084 = vadd.f32 0.0, %v2083
      %v2085 = vpop.f32.mrb[0].mxu0
      %2086 = vmatprep.mubr.f32.mxu0 0.0
      %2087 = vmatmul.mubr.f32.gmra.mrb[0].mxu0 %v1901
      %v2088 = vpop.f32.mrb[0].mxu0
      %v2089 = vadd.f32 0.0, %v2088
      %v2090 = vpop.f32.mrb[0].mxu0
      %2091 = vmatprep.mubr.f32.mxu0 0.0
      %2092 = vmatmul.mubr.f32.gmra.mrb[0].mxu0 %v1904
      %v2093 = vpop.f32.mrb[0].mxu0
      %v2094 = vadd.f32 0.0, %v2093
      %v2095 = vpop.f32.mrb[0].mxu0
      %2096 = vmatprep.mubr.f32.mxu0 0.0
      %2097 = vmatmul.mubr.f32.gmra.mrb[0].mxu0 %v1907
      %v2098 = vpop.f32.mrb[0].mxu0
      %v2099 = vadd.f32 0.0, %v2098
      %v2100 = vpop.f32.mrb[0].mxu0
      %2101 = vmatprep.mubr.f32.mxu0 0.0
      %2102 = vmatmul.mubr.f32.gmra.mrb[0].mxu0 %v1910
      %v2103 = vpop.f32.mrb[0].mxu0
      %v2104 = vadd.f32 0.0, %v2103
      %v2105 = vpop.f32.mrb[0].mxu0
      %2106 = vmatprep.mubr.f32.mxu0 0.0
      %2107 = vmatmul.mubr.f32.gmra.mrb[0].mxu0 %v1913
      %v2108 = vpop.f32.mrb[0].mxu0
      %v2109 = vadd.f32 0.0, %v2108
      %v2110 = vpop.f32.mrb[0].mxu0
      %2111 = vmatprep.mubr.f32.mxu0 0.0
      %2112 = vmatmul.mubr.f32.gmra.mrb[0].mxu0 %v1916
      %v2113 = vpop.f32.mrb[0].mxu0
      %v2114 = vadd.f32 0.0, %v2113
      %v2115 = vpop.f32.mrb[0].mxu0
      %2116 = vmatprep.mubr.f32.mxu0 0.0
      %2117 = vmatmul.mubr.f32.gmra.mrb[0].mxu0 %v1919
      %v2118 = vpop.f32.mrb[0].mxu0
      %v2119 = vadd.f32 0.0, %v2118
      %v2120 = vpop.f32.mrb[0].mxu0
      %2121 = vmatprep.mubr.f32.mxu0 0.0
      %2122 = vmatmul.mubr.f32.gmra.mrb[0].mxu0 %v1922
      %v2123 = vpop.f32.mrb[0].mxu0
      %v2124 = vadd.f32 0.0, %v2123
      %v2125 = vpop.f32.mrb[0].mxu0
      %2126 = vmatprep.mubr.f32.mxu0 0.0
      %2127 = vmatmul.mubr.f32.gmra.mrb[0].mxu0 %v1925
      %v2128 = vpop.f32.mrb[0].mxu0
      %v2129 = vadd.f32 0.0, %v2128
      %v2130 = vpop.f32.mrb[0].mxu0
      %2131 = vmatprep.mubr.f32.mxu0 0.0
      %2132 = vmatmul.mubr.f32.gmra.mrb[0].mxu0 %v1928
      %v2133 = vpop.f32.mrb[0].mxu0
      %v2134 = vadd.f32 0.0, %v2133
      %v2135 = vpop.f32.mrb[0].mxu0
      %2136 = vmatprep.mubr.f32.mxu0 0.0
      %2137 = vmatmul.mubr.f32.gmra.mrb[0].mxu0 %v1931
      %v2138 = vpop.f32.mrb[0].mxu0
      %v2139 = vadd.f32 0.0, %v2138
      %v2140 = vpop.f32.mrb[0].mxu0
      %2141 = vmatprep.mubr.f32.mxu0 0.0
      %2142 = vmatmul.mubr.f32.gmra.mrb[0].mxu0 %v1934
      %v2143 = vpop.f32.mrb[0].mxu0
      %v2144 = vadd.f32 0.0, %v2143
      %v2145 = vpop.f32.mrb[0].mxu0
      %2146 = vmatprep.mubr.f32.mxu0 0.0
      %2147 = vmatmul.mubr.f32.gmra.mrb[0].mxu0 %v1937
      %v2148 = vpop.f32.mrb[0].mxu0
      %v2149 = vadd.f32 0.0, %v2148
      %v2150 = vpop.f32.mrb[0].mxu0
      %2151 = vmatprep.mubr.f32.mxu0 0.0
      %2152 = vmatmul.mubr.f32.gmra.mrb[0].mxu0 %v1940
      %v2153 = vpop.f32.mrb[0].mxu0
      %v2154 = vadd.f32 0.0, %v2153
      %v2155 = vpop.f32.mrb[0].mxu0
      %2156 = vmatprep.mubr.f32.mxu0 0.0
      %2157 = vmatmul.mubr.f32.gmra.mrb[0].mxu0 %v1943
      %v2158 = vpop.f32.mrb[0].mxu0
      %v2159 = vadd.f32 0.0, %v2158
      %v2160 = vpop.f32.mrb[0].mxu0
      %2161 = vmatprep.mubr.f32.mxu0 0.0
      %2162 = vmatmul.mubr.f32.gmra.mrb[0].mxu0 %v1946
      %v2163 = vpop.f32.mrb[0].mxu0
      %v2164 = vadd.f32 0.0, %v2163
      %v2165 = vpop.f32.mrb[0].mxu0
      %2166 = vmatprep.mubr.f32.mxu0 0.0
      %2167 = vmatmul.mubr.f32.gmra.mrb[0].mxu0 %v1949
      %v2168 = vpop.f32.mrb[0].mxu0
      %v2169 = vadd.f32 0.0, %v2168
      %v2170 = vpop.f32.mrb[0].mxu0
      %2171 = vmatprep.mubr.f32.mxu0 0.0
      %2172 = vmatmul.mubr.f32.gmra.mrb[0].mxu0 %v1952
      %v2173 = vpop.f32.mrb[0].mxu0
      %v2174 = vadd.f32 0.0, %v2173
      %v2175 = vpop.f32.mrb[0].mxu0
      %2176 = vmatprep.mubr.f32.mxu0 0.0
      %2177 = vmatmul.mubr.f32.gmra.mrb[0].mxu0 %v1955
      %v2178 = vpop.f32.mrb[0].mxu0
      %v2179 = vadd.f32 0.0, %v2178
      %v2180 = vpop.f32.mrb[0].mxu0
      %2181 = vmatprep.mubr.f32.mxu0 0.0
      %2182 = vmatmul.mubr.f32.gmra.mrb[0].mxu0 %v1958
      %v2183 = vpop.f32.mrb[0].mxu0
      %v2184 = vadd.f32 0.0, %v2183
      %v2185 = vpop.f32.mrb[0].mxu0
      %2186 = vmatprep.mubr.f32.mxu0 0.0
      %2187 = vmatmul.mubr.f32.gmra.mrb[0].mxu0 %v1961
      %v2188 = vpop.f32.mrb[0].mxu0
      %v2189 = vadd.f32 0.0, %v2188
      %v2190 = vpop.f32.mrb[0].mxu0
      %2191 = vdwg.mxu0
      %v2192 = vld [vmem:[%s10] sm:$0x1]
      %v2194 = vlaneseq
      %v2195 = vshrl.u32 %v2194, 7
      %v2196 = vsub.s32 0, %v2195
      %v2197 = vrot.slane %v2192, %v2196
      %v2199 = vadd.f32 %v2034, %v2197
      %v2200 = vadd.f32 %v2039, %v2197
      %v2201 = vadd.f32 %v2044, %v2197
      %v2202 = vadd.f32 %v2049, %v2197
      %v2203 = vadd.f32 %v2054, %v2197
      %v2204 = vadd.f32 %v2059, %v2197
      %v2205 = vadd.f32 %v2064, %v2197
      %v2206 = vadd.f32 %v2069, %v2197
      %v2207 = vadd.f32 %v2074, %v2197
      %v2208 = vadd.f32 %v2079, %v2197
      %v2209 = vadd.f32 %v2084, %v2197
      %v2210 = vadd.f32 %v2089, %v2197
      %v2211 = vadd.f32 %v2094, %v2197
      %v2212 = vadd.f32 %v2099, %v2197
      %v2213 = vadd.f32 %v2104, %v2197
      %v2214 = vadd.f32 %v2109, %v2197
      %v2215 = vadd.f32 %v2114, %v2197
      %v2216 = vadd.f32 %v2119, %v2197
      %v2217 = vadd.f32 %v2124, %v2197
      %v2218 = vadd.f32 %v2129, %v2197
      %v2219 = vadd.f32 %v2134, %v2197
      %v2220 = vadd.f32 %v2139, %v2197
      %v2221 = vadd.f32 %v2144, %v2197
      %v2222 = vadd.f32 %v2149, %v2197
      %v2223 = vadd.f32 %v2154, %v2197
      %v2224 = vadd.f32 %v2159, %v2197
      %v2225 = vadd.f32 %v2164, %v2197
      %v2226 = vadd.f32 %v2169, %v2197
      %v2227 = vadd.f32 %v2174, %v2197
      %v2228 = vadd.f32 %v2179, %v2197
      %v2229 = vadd.f32 %v2184, %v2197
      %v2230 = vadd.f32 %v2189, %v2197
      %v2231 = vld [vmem:[%s381] sm:$0xff]
      %v2232 = vld [vmem:[%s381 + $0x8] sm:$0xff]
      %v2233 = vld [vmem:[%s381 + $0x10] sm:$0xff]
      %v2234 = vld [vmem:[%s381 + $0x18] sm:$0xff]
      %v2235 = vld [vmem:[%s381 + $0x20] sm:$0xff]
      %v2236 = vld [vmem:[%s381 + $0x28] sm:$0xff]
      %v2237 = vld [vmem:[%s381 + $0x30] sm:$0xff]
      %v2238 = vld [vmem:[%s381 + $0x38] sm:$0xff]
      %v2239 = vld [vmem:[%s381 + $0x40] sm:$0xff]
      %v2240 = vld [vmem:[%s381 + $0x48] sm:$0xff]
      %v2241 = vld [vmem:[%s381 + $0x50] sm:$0xff]
      %v2242 = vld [vmem:[%s381 + $0x58] sm:$0xff]
      %v2243 = vld [vmem:[%s381 + $0x60] sm:$0xff]
      %v2244 = vld [vmem:[%s381 + $0x68] sm:$0xff]
      %v2245 = vld [vmem:[%s381 + $0x70] sm:$0xff]
      %v2246 = vld [vmem:[%s381 + $0x78] sm:$0xff]
      %v2247 = vld [vmem:[%s381 + $0x80] sm:$0xff]
      %v2248 = vld [vmem:[%s381 + $0x88] sm:$0xff]
      %v2249 = vld [vmem:[%s381 + $0x90] sm:$0xff]
      %v2250 = vld [vmem:[%s381 + $0x98] sm:$0xff]
      %v2251 = vld [vmem:[%s381 + $0xa0] sm:$0xff]
      %v2252 = vld [vmem:[%s381 + $0xa8] sm:$0xff]
      %v2253 = vld [vmem:[%s381 + $0xb0] sm:$0xff]
      %v2254 = vld [vmem:[%s381 + $0xb8] sm:$0xff]
      %v2255 = vld [vmem:[%s381 + $0xc0] sm:$0xff]
      %v2256 = vld [vmem:[%s381 + $0xc8] sm:$0xff]
      %v2257 = vld [vmem:[%s381 + $0xd0] sm:$0xff]
      %v2258 = vld [vmem:[%s381 + $0xd8] sm:$0xff]
      %v2259 = vld [vmem:[%s381 + $0xe0] sm:$0xff]
      %v2260 = vld [vmem:[%s381 + $0xe8] sm:$0xff]
      %v2261 = vld [vmem:[%s381 + $0xf0] sm:$0xff]
      %v2262 = vld [vmem:[%s381 + $0xf8] sm:$0xff]
      %v2263 = vmul.f32 %v2231, %v2199
      %v2264 = vmul.f32 %v2232, %v2200
      %v2265 = vmul.f32 %v2233, %v2201
      %v2266 = vmul.f32 %v2234, %v2202
      %v2267 = vmul.f32 %v2235, %v2203
      %v2268 = vmul.f32 %v2236, %v2204
      %v2269 = vmul.f32 %v2237, %v2205
      %v2270 = vmul.f32 %v2238, %v2206
      %v2271 = vmul.f32 %v2239, %v2207
      %v2272 = vmul.f32 %v2240, %v2208
      %v2273 = vmul.f32 %v2241, %v2209
      %v2274 = vmul.f32 %v2242, %v2210
      %v2275 = vmul.f32 %v2243, %v2211
      %v2276 = vmul.f32 %v2244, %v2212
      %v2277 = vmul.f32 %v2245, %v2213
      %v2278 = vmul.f32 %v2246, %v2214
      %v2279 = vmul.f32 %v2247, %v2215
      %v2280 = vmul.f32 %v2248, %v2216
      %v2281 = vmul.f32 %v2249, %v2217
      %v2282 = vmul.f32 %v2250, %v2218
      %v2283 = vmul.f32 %v2251, %v2219
      %v2284 = vmul.f32 %v2252, %v2220
      %v2285 = vmul.f32 %v2253, %v2221
      %v2286 = vmul.f32 %v2254, %v2222
      %v2287 = vmul.f32 %v2255, %v2223
      %v2288 = vmul.f32 %v2256, %v2224
      %v2289 = vmul.f32 %v2257, %v2225
      %v2290 = vmul.f32 %v2258, %v2226
      %v2291 = vmul.f32 %v2259, %v2227
      %v2292 = vmul.f32 %v2260, %v2228
      %v2293 = vmul.f32 %v2261, %v2229
      %v2294 = vmul.f32 %v2262, %v2230
      %2295 = vst.msk [vmem:[%s386] sm:$0xff] %vm387, %v2263
      %2296 = vst.msk [vmem:[%s386 + $0x8] sm:$0xff] %vm387, %v2264
      %2297 = vst.msk [vmem:[%s386 + $0x10] sm:$0xff] %vm387, %v2265
      %2298 = vst.msk [vmem:[%s386 + $0x18] sm:$0xff] %vm387, %v2266
      %2299 = vst.msk [vmem:[%s386 + $0x20] sm:$0xff] %vm387, %v2267
      %2300 = vst.msk [vmem:[%s386 + $0x28] sm:$0xff] %vm387, %v2268
      %2301 = vst.msk [vmem:[%s386 + $0x30] sm:$0xff] %vm387, %v2269
      %2302 = vst.msk [vmem:[%s386 + $0x38] sm:$0xff] %vm387, %v2270
      %2303 = vst.msk [vmem:[%s386 + $0x40] sm:$0xff] %vm387, %v2271
      %2304 = vst.msk [vmem:[%s386 + $0x48] sm:$0xff] %vm387, %v2272
      %2305 = vst.msk [vmem:[%s386 + $0x50] sm:$0xff] %vm387, %v2273
      %2306 = vst.msk [vmem:[%s386 + $0x58] sm:$0xff] %vm387, %v2274
      %2307 = vst.msk [vmem:[%s386 + $0x60] sm:$0xff] %vm387, %v2275
      %2308 = vst.msk [vmem:[%s386 + $0x68] sm:$0xff] %vm387, %v2276
      %2309 = vst.msk [vmem:[%s386 + $0x70] sm:$0xff] %vm387, %v2277
      %2310 = vst.msk [vmem:[%s386 + $0x78] sm:$0xff] %vm387, %v2278
      %2311 = vst.msk [vmem:[%s386 + $0x80] sm:$0xff] %vm387, %v2279
      %2312 = vst.msk [vmem:[%s386 + $0x88] sm:$0xff] %vm387, %v2280
      %2313 = vst.msk [vmem:[%s386 + $0x90] sm:$0xff] %vm387, %v2281
      %2314 = vst.msk [vmem:[%s386 + $0x98] sm:$0xff] %vm387, %v2282
      %2315 = vst.msk [vmem:[%s386 + $0xa0] sm:$0xff] %vm387, %v2283
      %2316 = vst.msk [vmem:[%s386 + $0xa8] sm:$0xff] %vm387, %v2284
      %2317 = vst.msk [vmem:[%s386 + $0xb0] sm:$0xff] %vm387, %v2285
      %2318 = vst.msk [vmem:[%s386 + $0xb8] sm:$0xff] %vm387, %v2286
      %2319 = vst.msk [vmem:[%s386 + $0xc0] sm:$0xff] %vm387, %v2287
      %2320 = vst.msk [vmem:[%s386 + $0xc8] sm:$0xff] %vm387, %v2288
      %2321 = vst.msk [vmem:[%s386 + $0xd0] sm:$0xff] %vm387, %v2289
      %2322 = vst.msk [vmem:[%s386 + $0xd8] sm:$0xff] %vm387, %v2290
      %2323 = vst.msk [vmem:[%s386 + $0xe0] sm:$0xff] %vm387, %v2291
      %2324 = vst.msk [vmem:[%s386 + $0xe8] sm:$0xff] %vm387, %v2292
      %2325 = vst.msk [vmem:[%s386 + $0xf0] sm:$0xff] %vm387, %v2293
      %2326 = vst.msk [vmem:[%s386 + $0xf8] sm:$0xff] %vm387, %v2294
      %p2327 = scmp.lt.s32.totalorder %s22, 1
      %s2328 = scalar_select %p2327, %s22, 1
      %s2329 = smul.addr %s2328, 32
      %s2330 = smul.addr %s2329, 8
      %s2331 = scalar_lea.vmem %s11, %s2330
      // Predicated region
      $region65: #{tpu_custom_call.1} parent=63 // pred_check
        %p2332 = pneg %p276
      $region66: #{tpu_custom_call.1} parent=63 // pred_check_branch
        %2334 = sbr.rel (%p2332) target = $region68
      $region67: #{tpu_custom_call.1} parent=63 // pred_region
        _
      $region68: #{tpu_custom_call.1} parent=63 // pred_fallthru
        _
    $region64: #{tpu_custom_call.1} parent=5 // pred_fallthru
      _
    %p2335 = scmp.le.s32.totalorder 2, %s17
    // Predicated region
    $region69: #{tpu_custom_call.1} parent=5 // pred_check
      %p2336 = pneg %p2335
    $region70: #{tpu_custom_call.1} parent=5 // pred_check_branch
      %2338 = sbr.rel (%p2336) target = $region72
    $region71: #{tpu_custom_call.1} parent=5 // pred_region
      %s2339 = ssub.s32 %s17, 2
      // Predicated region
      $region73: #{tpu_custom_call.1} parent=71 // pred_check
        %p2340 = pneg %p282
      $region74: #{tpu_custom_call.1} parent=71 // pred_check_branch
        %2342 = sbr.rel (%p2340) target = $region76
      $region75: #{tpu_custom_call.1} parent=71 // pred_region
        %p2343 = scmp.lt.s32.totalorder %s23, 1
        %s2344 = scalar_select %p2343, %s23, 1
        %s2345 = smul.addr %s2344, 32
        %s2346 = smul.addr %s2345, 8
        %s2347 = scalar_lea.vmem %s11, %s2346
      $region76: #{tpu_custom_call.1} parent=71 // pred_fallthru
        _
    $region72: #{tpu_custom_call.1} parent=5 // pred_fallthru
      _
  $region6: #{tpu_custom_call.1} parent=0 // loop_footer
    %s21 = sadd.s32 1, %s17
  $region7: #{tpu_custom_call.1} parent=0 // loop_footer_branch
    %16 = sbr.rel target = $region3
  $region8: #{tpu_custom_call.1} parent=0 // loop_exit
    _

</llo_original>
